<compile_context>
chip_gen: v6e
topology: v6e:2x2x1
jax: 0.10.0
libtpu: 0.0.40
codegen_flags: <defaults>
</compile_context>

<pallas_src>
import numpy as np

import jax
import jax.numpy as jnp
from jax import lax
from jax.experimental import pallas as pl
from jax.experimental.pallas import tpu as pltpu


def _cbam_kernel(x_ref, w1t_ref, w2t_ref, wsp_ref, cb_ref, o_ref):
    """CBAM forward for one batch chunk.

    x_ref  : (bb, C, HW)   VMEM  input feature map, flattened spatial (bf16/f32)
    w1t_ref: (C, hid)      VMEM  fc1 weight, transposed (f32)
    w2t_ref: (hid, C)      VMEM  fc2 weight, transposed (f32)
    wsp_ref: (2*HW, HW)    VMEM  dense spatial-conv matrix (bf16/f32)
    cb_ref : (1,)          SMEM  spatial conv bias (f32)
    o_ref  : (bb, C, HW)   VMEM  output (same dtype as x_ref)
    """
    x = x_ref[...].astype(jnp.float32)                   # elementwise math in f32
    bb, C, HW = x.shape

    # ---------------- channel attention ----------------
    # TODO(synk): the PyTorch module applies nn.AdaptiveMaxPool1d(1) to a 4D
    # NCHW tensor and feeds (b,c,1[,1]) tensors straight into nn.Linear; both
    # raise in PyTorch. Implemented the intended CBAM semantics: global
    # spatial max/avg pool -> shared bias-free MLP -> sum -> sigmoid.
    mx = jnp.max(x, axis=2)                              # (bb, C)
    av = jnp.sum(x, axis=2) * (1.0 / HW)                 # (bb, C)
    pooled = jnp.concatenate([mx, av], axis=0)           # (2*bb, C)

    # hid = C // ratio is tiny (2 here): the MLP is a handful of vregs of VPU
    # work, so do broadcast-multiply + reduce instead of two degenerate MXU
    # matmuls (avoids two MXU push->pop round trips on a latency-bound kernel).
    w1t = w1t_ref[...]                                   # (C, hid) f32
    w2t = w2t_ref[...]                                   # (hid, C) f32
    h = jnp.sum(pooled[:, :, None] * w1t[None, :, :], axis=1)   # (2*bb, hid)
    h = jnp.maximum(h, 0.0)                                      # ReLU
    fc = jnp.sum(h[:, :, None] * w2t[None, :, :], axis=1)       # (2*bb, C)
    logits = fc[:bb] + fc[bb:]                           # (bb, C)
    ch_scale = pl.reciprocal(1.0 + jnp.exp(-logits), approx=True)   # sigmoid
    y = x * ch_scale[:, :, None]                         # (bb, C, HW) f32

    # ---------------- spatial attention ----------------
    # TODO(synk): torch.max(X, dim=1, keepdim=True) returns (values, indices)
    # which is then torch.cat'ed (raises in PyTorch); used .values semantics.
    sp_max = jnp.max(y, axis=1)                          # (bb, HW)
    sp_avg = jnp.sum(y, axis=1) * (1.0 / C)              # (bb, HW)
    pooled_sp = jnp.concatenate([sp_max, sp_avg], axis=1)        # (bb, 2*HW)

    # 7x7 Conv2d(2 -> 1), stride 1, "same" zero padding == one MXU matmul
    # against the prefolded dense matrix; bf16 inputs, f32 accumulation.
    acc = jnp.dot(pooled_sp.astype(wsp_ref.dtype), wsp_ref[...],
                  preferred_element_type=jnp.float32)    # (bb, HW)
    acc = acc + cb_ref[0]
    sp_scale = pl.reciprocal(1.0 + jnp.exp(-acc), approx=True)   # sigmoid
    o_ref[...] = (y * sp_scale[:, None, :]).astype(o_ref.dtype)


def _build_spatial_conv_matrix(conv_w, H, W, K):
    """Fold Conv2d(2,1,K, padding=K//2) weights + zero padding into (2*HW, HW).

    Row index = ci*HW + input_position, column = output_position. Built as a
    gather from the 2*K*K weights through a static index table (sentinel
    index -> 0 for out-of-bounds taps).
    """
    HW = H * W
    half = K // 2
    n_taps = 2 * K * K
    tap_idx = np.full((2 * HW, HW), n_taps, dtype=np.int32)   # sentinel -> 0.0

    q = np.arange(HW)
    oy, ox = q // W, q % W
    for ci in range(2):
        for ky in range(K):
            dy = ky - half
            for kx in range(K):
                dx = kx - half
                iy, ix = oy + dy, ox + dx
                valid = (iy >= 0) & (iy < H) & (ix >= 0) & (ix < W)
                p = (iy * W + ix)[valid] + ci * HW
                tap_idx[p, q[valid]] = (ci * K + ky) * K + kx

    table = jnp.concatenate([conv_w.reshape(-1).astype(jnp.float32),
                             jnp.zeros((1,), jnp.float32)])   # (2*K*K + 1,)
    return table[tap_idx]                                     # (2*HW, HW) f32


def make_cbam_params(w1, w2, conv_w, conv_b, H, W, *, kernel_size=7,
                     wsp_dtype=jnp.bfloat16):
    """Prepare device-resident CBAM parameters ONCE (hoisted off the forward path).

    The O(HW^2) gather that builds the dense spatial-conv matrix W_sp runs here,
    at weight-prep time, not per forward call.
    """
    w1t = jnp.asarray(w1, jnp.float32).T                 # (C, hid)
    w2t = jnp.asarray(w2, jnp.float32).T                 # (hid, C)
    w_sp = _build_spatial_conv_matrix(jnp.asarray(conv_w, jnp.float32),
                                      H, W, kernel_size).astype(wsp_dtype)
    cb = jnp.asarray(conv_b, jnp.float32).reshape(1)
    return {"w1t": w1t, "w2t": w2t, "w_sp": w_sp, "cb": cb,
            "H": H, "W": W, "kernel_size": kernel_size}


def _num_tensorcores():
    """Best-effort TensorCore count of the local chip (1 on v5e/v6e, 2 on v7x)."""
    try:
        info = pltpu.get_tpu_info()
        for name in ("num_cores", "core_count", "num_tensorcores",
                     "tensorcore_count", "num_cores_per_chip"):
            v = getattr(info, name, None)
            if v:
                return int(v)
    except Exception:
        pass
    try:
        kind = jax.devices()[0].device_kind.lower()
        if "v7" in kind or "7x" in kind:
            return 2
    except Exception:
        pass
    return 1


def cbam_forward(x, params):
    """CBAM forward. x: (B, C, H, W) float array (bf16 recommended for storage)."""
    B, C, H, W = x.shape
    assert (H, W) == (params["H"], params["W"]), "params built for a different H, W"
    HW = H * W
    w1t, w2t, w_sp, cb = params["w1t"], params["w2t"], params["w_sp"], params["cb"]
    hidden = w1t.shape[1]

    # Blocks below use the full (C, HW) extent so any HW is legal; keep H*W a
    # multiple of 128 for lane-dense (unmasked) stores. 16x16 = 256 is fine.
    x_flat = x.reshape(B, C, HW)

    # Split the batch across TensorCores only when there are >= 2 of them
    # (v7x); on single-TC v5e/v6e an extra grid step is pure overhead.
    n_tc = _num_tensorcores()
    bb = B // 2 if (n_tc >= 2 and B % 2 == 0) else B
    grid = (B // bb,)

    # Explicit scoped-VMEM budget (defaults: 16 MiB v5e / 32 MiB v6e, v7x).
    est = 2 * 2 * bb * C * HW * x_flat.dtype.itemsize          # x + out, double buffered
    est += 2 * (2 * HW) * HW * w_sp.dtype.itemsize             # W_sp (conservative x2)
    est += 2 * 4 * (w1t.size + w2t.size)
    vmem_limit = int(min(max(est + (1 << 20), 32 << 20), 60 << 20))

    def build(single_buffer_weights):
        def weight_spec(shape):
            if single_buffer_weights:
                # Loop-invariant operand: the second pipeline buffer is dead VMEM.
                return pl.BlockSpec(shape, lambda b: (0, 0),
                                    pipeline_mode=pl.Buffered(1))
            return pl.BlockSpec(shape, lambda b: (0, 0))

        return pl.pallas_call(
            _cbam_kernel,
            out_shape=jax.ShapeDtypeStruct((B, C, HW), x_flat.dtype),
            grid=grid,
            in_specs=[
                pl.BlockSpec((bb, C, HW), lambda b: (b, 0, 0)),
                weight_spec((C, hidden)),
                weight_spec((hidden, C)),
                # TODO(synk): for large feature maps (HW >~ 2048) tile this spec
                # over output columns (extra grid axis) to bound W_sp's O(HW^2)
                # VMEM footprint on v7x (64 MiB physical VMEM).
                weight_spec((2 * HW, HW)),
                pl.BlockSpec(memory_space=pltpu.MemorySpace.SMEM),
            ],
            out_specs=pl.BlockSpec((bb, C, HW), lambda b: (b, 0, 0)),
            input_output_aliases={0: 0},   # output reuses x's HBM allocation
            compiler_params=pltpu.CompilerParams(
                dimension_semantics=("parallel",),
                vmem_limit_bytes=vmem_limit),
        )

    args = (x_flat, w1t, w2t, w_sp, cb)
    try:
        out_flat = build(True)(*args)
    except Exception:
        # pl.Buffered(1) single-buffering not accepted by this jax/Mosaic
        # version: fall back to default double buffering (only costs VMEM
        # headroom, not correctness or speed at this size).
        out_flat = build(False)(*args)
    return out_flat.reshape(B, C, H, W)


def cbam_reference(x, w1, w2, conv_w, conv_b, *, kernel_size=7):
    """Plain-JAX f32 reference (intended CBAM semantics) for verification."""
    mx = jnp.max(x, axis=(2, 3))
    av = jnp.mean(x, axis=(2, 3))

    def mlp(v):
        return jnp.maximum(v @ w1.T, 0.0) @ w2.T

    ch_scale = jax.nn.sigmoid(mlp(mx) + mlp(av))[:, :, None, None]
    y = x * ch_scale
    pool = jnp.concatenate([jnp.max(y, axis=1, keepdims=True),
                            jnp.mean(y, axis=1, keepdims=True)], axis=1)
    p = kernel_size // 2
    conv = lax.conv_general_dilated(
        pool, conv_w, window_strides=(1, 1), padding=((p, p), (p, p)),
        dimension_numbers=("NCHW", "OIHW", "NCHW"))
    sp_scale = jax.nn.sigmoid(conv + conv_b[None, :, None, None])
    return y * sp_scale


if __name__ == "__main__":
    B, C, H, W = 2, 32, 16, 16
    ratio, ksize = 16, 7            # CBAM defaults
    hidden = C // ratio             # = 2

    key = jax.random.PRNGKey(0)
    kx, k1, k2, k3, k4 = jax.random.split(key, 5)
    x = jax.random.normal(kx, (B, C, H, W), jnp.float32)
    w1 = 0.2 * jax.random.normal(k1, (hidden, C), jnp.float32)       # Linear(C, C//r, bias=False).weight
    w2 = 0.2 * jax.random.normal(k2, (C, hidden), jnp.float32)       # Linear(C//r, C, bias=False).weight
    conv_w = 0.1 * jax.random.normal(k3, (1, 2, ksize, ksize), jnp.float32)  # Conv2d(2,1,7).weight
    conv_b = 0.1 * jax.random.normal(k4, (1,), jnp.float32)                  # Conv2d(2,1,7).bias

    # bf16 storage for activations and W_sp (halves HBM traffic). Quantize the
    # inputs once so the f32 reference sees the same values; the remaining
    # error is output-side bf16 rounding + approx-EUP sigmoid (<< 5e-2).
    x_q = x.astype(jnp.bfloat16)
    conv_w_q = conv_w.astype(jnp.bfloat16).astype(jnp.float32)

    params = make_cbam_params(w1, w2, conv_w_q, conv_b, H, W,
                              kernel_size=ksize, wsp_dtype=jnp.bfloat16)

    out = cbam_forward(x_q, params)
    jax.block_until_ready(out)

    ref = cbam_reference(x_q.astype(jnp.float32), w1, w2, conv_w_q, conv_b,
                         kernel_size=ksize)
    err = float(jnp.max(jnp.abs(out.astype(jnp.float32) - ref)))
    assert err < 5e-2, f"kernel vs reference mismatch: max abs err = {err}"

    print("KERNEL_OK")
</pallas_src>

<mosaic_0001>
module attributes {stable_mosaic.version = 11 : i64} {
  func.func @_cbam_kernel(%arg0: i32, %arg1: memref<2x32x256xbf16, #tpu.memory_space<vmem>>, %arg2: memref<32x2xf32, #tpu.memory_space<vmem>>, %arg3: memref<2x32xf32, #tpu.memory_space<vmem>>, %arg4: memref<512x256xbf16, #tpu.memory_space<vmem>>, %arg5: memref<1xf32, #tpu.memory_space<smem>>, %arg6: memref<2x32x256xbf16, #tpu.memory_space<vmem>>) attributes {dimension_semantics = [#tpu.dimension_semantics<parallel>], iteration_bounds = array<i64: 1>, scalar_prefetch = 0 : i64, scratch_operands = 0 : i64, tpu.core_type = #tpu.core_type<tc>, window_params = [{transform_indices = @transform_0, window_bounds = array<i64: 2, 32, 256>}, {pipeline_mode = #tpu.pipeline_mode<synchronous>, transform_indices = @transform_1, window_bounds = array<i64: 32, 2>}, {pipeline_mode = #tpu.pipeline_mode<synchronous>, transform_indices = @transform_2, window_bounds = array<i64: 2, 32>}, {pipeline_mode = #tpu.pipeline_mode<synchronous>, transform_indices = @transform_3, window_bounds = array<i64: 512, 256>}, {transform_indices = @transform_4, window_bounds = array<i64: 1>}, {transform_indices = @transform_5, window_bounds = array<i64: 2, 32, 256>}]} {
    %c0 = arith.constant 0 : index
    %c0_0 = arith.constant 0 : index
    %c0_1 = arith.constant 0 : index
    %0 = vector.load %arg1[%c0, %c0_0, %c0_1] : memref<2x32x256xbf16, #tpu.memory_space<vmem>>, vector<2x32x256xbf16>
    %1 = arith.extf %0 : vector<2x32x256xbf16> to vector<2x32x256xf32>
    %cst = arith.constant dense<0xFF800000> : vector<2x32xf32>
    %2 = vector.multi_reduction <maximumf>, %1, %cst [2] : vector<2x32x256xf32> to vector<2x32xf32>
    %cst_2 = arith.constant dense<0.000000e+00> : vector<2x32xf32>
    %3 = vector.multi_reduction <add>, %1, %cst_2 [2] : vector<2x32x256xf32> to vector<2x32xf32>
    %cst_3 = arith.constant 3.906250e-03 : f32
    %4 = vector.broadcast %cst_3 : f32 to vector<2x32xf32>
    %5 = arith.mulf %3, %4 : vector<2x32xf32>
    %6 = tpu.concatenate %2, %5 in 0 : vector<2x32xf32>, vector<2x32xf32> -> vector<4x32xf32>
    %c0_4 = arith.constant 0 : index
    %c0_5 = arith.constant 0 : index
    %7 = vector.load %arg2[%c0_4, %c0_5] : memref<32x2xf32, #tpu.memory_space<vmem>>, vector<32x2xf32>
    %c0_6 = arith.constant 0 : index
    %c0_7 = arith.constant 0 : index
    %8 = vector.load %arg3[%c0_6, %c0_7] : memref<2x32xf32, #tpu.memory_space<vmem>>, vector<2x32xf32>
    %9 = vector.shape_cast %6 : vector<4x32xf32> to vector<4x32x1xf32>
    %10 = vector.shape_cast %7 : vector<32x2xf32> to vector<1x32x2xf32>
    %11 = vector.broadcast %9 : vector<4x32x1xf32> to vector<4x32x2xf32>
    %12 = vector.broadcast %10 : vector<1x32x2xf32> to vector<4x32x2xf32>
    %13 = arith.mulf %11, %12 : vector<4x32x2xf32>
    %cst_8 = arith.constant dense<0.000000e+00> : vector<4x2xf32>
    %14 = vector.multi_reduction <add>, %13, %cst_8 [1] : vector<4x32x2xf32> to vector<4x2xf32>
    %cst_9 = arith.constant 0.000000e+00 : f32
    %15 = vector.broadcast %cst_9 : f32 to vector<4x2xf32>
    %16 = arith.maximumf %14, %15 : vector<4x2xf32>
    %17 = vector.shape_cast %16 : vector<4x2xf32> to vector<4x2x1xf32>
    %18 = vector.shape_cast %8 : vector<2x32xf32> to vector<1x2x32xf32>
    %19 = vector.broadcast %17 : vector<4x2x1xf32> to vector<4x2x32xf32>
    %20 = vector.broadcast %18 : vector<1x2x32xf32> to vector<4x2x32xf32>
    %21 = arith.mulf %19, %20 : vector<4x2x32xf32>
    %cst_10 = arith.constant dense<0.000000e+00> : vector<4x32xf32>
    %22 = vector.multi_reduction <add>, %21, %cst_10 [1] : vector<4x2x32xf32> to vector<4x32xf32>
    %23 = vector.extract_strided_slice %22 {offsets = [0, 0], sizes = [2, 32], strides = [1, 1]} : vector<4x32xf32> to vector<2x32xf32>
    %24 = vector.extract_strided_slice %22 {offsets = [2, 0], sizes = [2, 32], strides = [1, 1]} : vector<4x32xf32> to vector<2x32xf32>
    %25 = arith.addf %23, %24 : vector<2x32xf32>
    %cst_11 = arith.constant 0.000000e+00 : f32
    %26 = vector.broadcast %cst_11 : f32 to vector<2x32xf32>
    %27 = arith.subf %26, %25 : vector<2x32xf32>
    %28 = math.exp %27 : vector<2x32xf32>
    %cst_12 = arith.constant 1.000000e+00 : f32
    %29 = vector.broadcast %cst_12 : f32 to vector<2x32xf32>
    %30 = arith.addf %29, %28 : vector<2x32xf32>
    %31 = tpu.reciprocal %30 {approx = true} : vector<2x32xf32> -> vector<2x32xf32>
    %32 = vector.shape_cast %31 : vector<2x32xf32> to vector<2x32x1xf32>
    %33 = vector.broadcast %32 : vector<2x32x1xf32> to vector<2x32x256xf32>
    %34 = arith.mulf %1, %33 : vector<2x32x256xf32>
    %cst_13 = arith.constant dense<0xFF800000> : vector<2x256xf32>
    %35 = vector.multi_reduction <maximumf>, %34, %cst_13 [1] : vector<2x32x256xf32> to vector<2x256xf32>
    %cst_14 = arith.constant dense<0.000000e+00> : vector<2x256xf32>
    %36 = vector.multi_reduction <add>, %34, %cst_14 [1] : vector<2x32x256xf32> to vector<2x256xf32>
    %cst_15 = arith.constant 3.125000e-02 : f32
    %37 = vector.broadcast %cst_15 : f32 to vector<2x256xf32>
    %38 = arith.mulf %36, %37 : vector<2x256xf32>
    %39 = tpu.concatenate %35, %38 in 1 : vector<2x256xf32>, vector<2x256xf32> -> vector<2x512xf32>
    %40 = arith.truncf %39 : vector<2x512xf32> to vector<2x512xbf16>
    %c0_16 = arith.constant 0 : index
    %c0_17 = arith.constant 0 : index
    %41 = vector.load %arg4[%c0_16, %c0_17] : memref<512x256xbf16, #tpu.memory_space<vmem>>, vector<512x256xbf16>
    %cst_18 = arith.constant dense<0.000000e+00> : vector<2x256xf32>
    %42 = tpu.matmul %40, %41, %cst_18 {dimension_numbers = #tpu.dot_dimension_numbers<[1], [0], [0], [1], [0, 0, 1, 1], [], []>} : vector<2x512xbf16>, vector<512x256xbf16>, vector<2x256xf32> -> vector<2x256xf32>
    %c0_19 = arith.constant 0 : index
    %43 = memref.load %arg5[%c0_19] : memref<1xf32, #tpu.memory_space<smem>>
    %44 = vector.broadcast %43 : f32 to vector<2x256xf32>
    %45 = arith.addf %42, %44 : vector<2x256xf32>
    %cst_20 = arith.constant 0.000000e+00 : f32
    %46 = vector.broadcast %cst_20 : f32 to vector<2x256xf32>
    %47 = arith.subf %46, %45 : vector<2x256xf32>
    %48 = math.exp %47 : vector<2x256xf32>
    %cst_21 = arith.constant 1.000000e+00 : f32
    %49 = vector.broadcast %cst_21 : f32 to vector<2x256xf32>
    %50 = arith.addf %49, %48 : vector<2x256xf32>
    %51 = tpu.reciprocal %50 {approx = true} : vector<2x256xf32> -> vector<2x256xf32>
    %52 = vector.shape_cast %51 : vector<2x256xf32> to vector<2x1x256xf32>
    %53 = vector.broadcast %52 : vector<2x1x256xf32> to vector<2x32x256xf32>
    %54 = arith.mulf %34, %53 : vector<2x32x256xf32>
    %55 = arith.truncf %54 : vector<2x32x256xf32> to vector<2x32x256xbf16>
    %c0_22 = arith.constant 0 : index
    %c0_23 = arith.constant 0 : index
    %c0_24 = arith.constant 0 : index
    %56 = vector.load %arg6[%c0_22, %c0_23, %c0_24] : memref<2x32x256xbf16, #tpu.memory_space<vmem>>, vector<2x32x256xbf16>
    tpu.vector_store %arg6[%c0_22, %c0_23, %c0_24], %55 {strides = array<i32>} : memref<2x32x256xbf16, #tpu.memory_space<vmem>>, vector<2x32x256xbf16>,
    return
  }
  func.func @transform_0(%arg0: i32) -> (i32, i32, i32) {
    %c0_i32 = arith.constant 0 : i32
    %c0_i32_0 = arith.constant 0 : i32
    %c0_i32_1 = arith.constant 0 : i32
    return %arg0, %c0_i32, %c0_i32_0 : i32, i32, i32
  }
  func.func @transform_1(%arg0: i32) -> (i32, i32) {
    %c0_i32 = arith.constant 0 : i32
    %c0_i32_0 = arith.constant 0 : i32
    %c0_i32_1 = arith.constant 0 : i32
    return %c0_i32, %c0_i32_0 : i32, i32
  }
  func.func @transform_2(%arg0: i32) -> (i32, i32) {
    %c0_i32 = arith.constant 0 : i32
    %c0_i32_0 = arith.constant 0 : i32
    %c0_i32_1 = arith.constant 0 : i32
    return %c0_i32, %c0_i32_0 : i32, i32
  }
  func.func @transform_3(%arg0: i32) -> (i32, i32) {
    %c0_i32 = arith.constant 0 : i32
    %c0_i32_0 = arith.constant 0 : i32
    %c0_i32_1 = arith.constant 0 : i32
    return %c0_i32, %c0_i32_0 : i32, i32
  }
  func.func @transform_4(%arg0: i32) -> i32 {
    %c0_i32 = arith.constant 0 : i32
    %c0_i32_0 = arith.constant 0 : i32
    return %c0_i32 : i32
  }
  func.func @transform_5(%arg0: i32) -> (i32, i32, i32) {
    %c0_i32 = arith.constant 0 : i32
    %c0_i32_0 = arith.constant 0 : i32
    %c0_i32_1 = arith.constant 0 : i32
    return %arg0, %c0_i32, %c0_i32_0 : i32, i32, i32
  }
}

module attributes {stable_mosaic.version = 11 : i64} {
  func.func @_cbam_kernel(%arg0: i32, %arg1: memref<2x32x256xbf16, #tpu.memory_space<vmem>>, %arg2: memref<32x2xf32, #tpu.memory_space<vmem>>, %arg3: memref<2x32xf32, #tpu.memory_space<vmem>>, %arg4: memref<512x256xbf16, #tpu.memory_space<vmem>>, %arg5: memref<1xf32, #tpu.memory_space<smem>>, %arg6: memref<2x32x256xbf16, #tpu.memory_space<vmem>>) attributes {dimension_semantics = [#tpu.dimension_semantics<parallel>], iteration_bounds = array<i64: 1>, scalar_prefetch = 0 : i64, scratch_operands = 0 : i64, tpu.core_type = #tpu.core_type<tc>, window_params = [{transform_indices = @transform_0, window_bounds = array<i64: 2, 32, 256>}, {pipeline_mode = #tpu.pipeline_mode<synchronous>, transform_indices = @transform_1, window_bounds = array<i64: 32, 2>}, {pipeline_mode = #tpu.pipeline_mode<synchronous>, transform_indices = @transform_2, window_bounds = array<i64: 2, 32>}, {pipeline_mode = #tpu.pipeline_mode<synchronous>, transform_indices = @transform_3, window_bounds = array<i64: 512, 256>}, {transform_indices = @transform_4, window_bounds = array<i64: 1>}, {transform_indices = @transform_5, window_bounds = array<i64: 2, 32, 256>}]} {
    %c0 = arith.constant 0 : index
    %c0_0 = arith.constant 0 : index
    %c0_1 = arith.constant 0 : index
    %0 = vector.load %arg1[%c0, %c0_0, %c0_1] : memref<2x32x256xbf16, #tpu.memory_space<vmem>>, vector<2x32x256xbf16>
    %1 = arith.extf %0 : vector<2x32x256xbf16> to vector<2x32x256xf32>
    %cst = arith.constant dense<0xFF800000> : vector<2x32xf32>
    %2 = vector.multi_reduction <maximumf>, %1, %cst [2] : vector<2x32x256xf32> to vector<2x32xf32>
    %cst_2 = arith.constant dense<0.000000e+00> : vector<2x32xf32>
    %3 = vector.multi_reduction <add>, %1, %cst_2 [2] : vector<2x32x256xf32> to vector<2x32xf32>
    %cst_3 = arith.constant 3.906250e-03 : f32
    %4 = vector.broadcast %cst_3 : f32 to vector<2x32xf32>
    %5 = arith.mulf %3, %4 : vector<2x32xf32>
    %6 = tpu.concatenate %2, %5 in 0 : vector<2x32xf32>, vector<2x32xf32> -> vector<4x32xf32>
    %c0_4 = arith.constant 0 : index
    %c0_5 = arith.constant 0 : index
    %7 = vector.load %arg2[%c0_4, %c0_5] : memref<32x2xf32, #tpu.memory_space<vmem>>, vector<32x2xf32>
    %c0_6 = arith.constant 0 : index
    %c0_7 = arith.constant 0 : index
    %8 = vector.load %arg3[%c0_6, %c0_7] : memref<2x32xf32, #tpu.memory_space<vmem>>, vector<2x32xf32>
    %9 = vector.shape_cast %6 : vector<4x32xf32> to vector<4x32x1xf32>
    %10 = vector.shape_cast %7 : vector<32x2xf32> to vector<1x32x2xf32>
    %11 = vector.broadcast %9 : vector<4x32x1xf32> to vector<4x32x2xf32>
    %12 = vector.broadcast %10 : vector<1x32x2xf32> to vector<4x32x2xf32>
    %13 = arith.mulf %11, %12 : vector<4x32x2xf32>
    %cst_8 = arith.constant dense<0.000000e+00> : vector<4x2xf32>
    %14 = vector.multi_reduction <add>, %13, %cst_8 [1] : vector<4x32x2xf32> to vector<4x2xf32>
    %cst_9 = arith.constant 0.000000e+00 : f32
    %15 = vector.broadcast %cst_9 : f32 to vector<4x2xf32>
    %16 = arith.maximumf %14, %15 : vector<4x2xf32>
    %17 = vector.shape_cast %16 : vector<4x2xf32> to vector<4x2x1xf32>
    %18 = vector.shape_cast %8 : vector<2x32xf32> to vector<1x2x32xf32>
    %19 = vector.broadcast %17 : vector<4x2x1xf32> to vector<4x2x32xf32>
    %20 = vector.broadcast %18 : vector<1x2x32xf32> to vector<4x2x32xf32>
    %21 = arith.mulf %19, %20 : vector<4x2x32xf32>
    %cst_10 = arith.constant dense<0.000000e+00> : vector<4x32xf32>
    %22 = vector.multi_reduction <add>, %21, %cst_10 [1] : vector<4x2x32xf32> to vector<4x32xf32>
    %23 = vector.extract_strided_slice %22 {offsets = [0, 0], sizes = [2, 32], strides = [1, 1]} : vector<4x32xf32> to vector<2x32xf32>
    %24 = vector.extract_strided_slice %22 {offsets = [2, 0], sizes = [2, 32], strides = [1, 1]} : vector<4x32xf32> to vector<2x32xf32>
    %25 = arith.addf %23, %24 : vector<2x32xf32>
    %cst_11 = arith.constant 0.000000e+00 : f32
    %26 = vector.broadcast %cst_11 : f32 to vector<2x32xf32>
    %27 = arith.subf %26, %25 : vector<2x32xf32>
    %28 = math.exp %27 : vector<2x32xf32>
    %cst_12 = arith.constant 1.000000e+00 : f32
    %29 = vector.broadcast %cst_12 : f32 to vector<2x32xf32>
    %30 = arith.addf %29, %28 : vector<2x32xf32>
    %31 = tpu.reciprocal %30 {approx = true} : vector<2x32xf32> -> vector<2x32xf32>
    %32 = vector.shape_cast %31 : vector<2x32xf32> to vector<2x32x1xf32>
    %33 = vector.broadcast %32 : vector<2x32x1xf32> to vector<2x32x256xf32>
    %34 = arith.mulf %1, %33 : vector<2x32x256xf32>
    %cst_13 = arith.constant dense<0xFF800000> : vector<2x256xf32>
    %35 = vector.multi_reduction <maximumf>, %34, %cst_13 [1] : vector<2x32x256xf32> to vector<2x256xf32>
    %cst_14 = arith.constant dense<0.000000e+00> : vector<2x256xf32>
    %36 = vector.multi_reduction <add>, %34, %cst_14 [1] : vector<2x32x256xf32> to vector<2x256xf32>
    %cst_15 = arith.constant 3.125000e-02 : f32
    %37 = vector.broadcast %cst_15 : f32 to vector<2x256xf32>
    %38 = arith.mulf %36, %37 : vector<2x256xf32>
    %39 = tpu.concatenate %35, %38 in 1 : vector<2x256xf32>, vector<2x256xf32> -> vector<2x512xf32>
    %40 = arith.truncf %39 : vector<2x512xf32> to vector<2x512xbf16>
    %c0_16 = arith.constant 0 : index
    %c0_17 = arith.constant 0 : index
    %41 = vector.load %arg4[%c0_16, %c0_17] : memref<512x256xbf16, #tpu.memory_space<vmem>>, vector<512x256xbf16>
    %cst_18 = arith.constant dense<0.000000e+00> : vector<2x256xf32>
    %42 = tpu.matmul %40, %41, %cst_18 {dimension_numbers = #tpu.dot_dimension_numbers<[1], [0], [0], [1], [0, 0, 1, 1], [], []>} : vector<2x512xbf16>, vector<512x256xbf16>, vector<2x256xf32> -> vector<2x256xf32>
    %c0_19 = arith.constant 0 : index
    %43 = memref.load %arg5[%c0_19] : memref<1xf32, #tpu.memory_space<smem>>
    %44 = vector.broadcast %43 : f32 to vector<2x256xf32>
    %45 = arith.addf %42, %44 : vector<2x256xf32>
    %cst_20 = arith.constant 0.000000e+00 : f32
    %46 = vector.broadcast %cst_20 : f32 to vector<2x256xf32>
    %47 = arith.subf %46, %45 : vector<2x256xf32>
    %48 = math.exp %47 : vector<2x256xf32>
    %cst_21 = arith.constant 1.000000e+00 : f32
    %49 = vector.broadcast %cst_21 : f32 to vector<2x256xf32>
    %50 = arith.addf %49, %48 : vector<2x256xf32>
    %51 = tpu.reciprocal %50 {approx = true} : vector<2x256xf32> -> vector<2x256xf32>
    %52 = vector.shape_cast %51 : vector<2x256xf32> to vector<2x1x256xf32>
    %53 = vector.broadcast %52 : vector<2x1x256xf32> to vector<2x32x256xf32>
    %54 = arith.mulf %34, %53 : vector<2x32x256xf32>
    %55 = arith.truncf %54 : vector<2x32x256xf32> to vector<2x32x256xbf16>
    %c0_22 = arith.constant 0 : index
    %c0_23 = arith.constant 0 : index
    %c0_24 = arith.constant 0 : index
    %56 = vector.load %arg6[%c0_22, %c0_23, %c0_24] : memref<2x32x256xbf16, #tpu.memory_space<vmem>>, vector<2x32x256xbf16>
    tpu.vector_store %arg6[%c0_22, %c0_23, %c0_24], %55 {strides = array<i32>} : memref<2x32x256xbf16, #tpu.memory_space<vmem>>, vector<2x32x256xbf16>,
    return
  }
  func.func @transform_0(%arg0: i32) -> (i32, i32, i32) {
    %c0_i32 = arith.constant 0 : i32
    %c0_i32_0 = arith.constant 0 : i32
    %c0_i32_1 = arith.constant 0 : i32
    return %arg0, %c0_i32, %c0_i32_0 : i32, i32, i32
  }
  func.func @transform_1(%arg0: i32) -> (i32, i32) {
    %c0_i32 = arith.constant 0 : i32
    %c0_i32_0 = arith.constant 0 : i32
    %c0_i32_1 = arith.constant 0 : i32
    return %c0_i32, %c0_i32_0 : i32, i32
  }
  func.func @transform_2(%arg0: i32) -> (i32, i32) {
    %c0_i32 = arith.constant 0 : i32
    %c0_i32_0 = arith.constant 0 : i32
    %c0_i32_1 = arith.constant 0 : i32
    return %c0_i32, %c0_i32_0 : i32, i32
  }
  func.func @transform_3(%arg0: i32) -> (i32, i32) {
    %c0_i32 = arith.constant 0 : i32
    %c0_i32_0 = arith.constant 0 : i32
    %c0_i32_1 = arith.constant 0 : i32
    return %c0_i32, %c0_i32_0 : i32, i32
  }
  func.func @transform_4(%arg0: i32) -> i32 {
    %c0_i32 = arith.constant 0 : i32
    %c0_i32_0 = arith.constant 0 : i32
    return %c0_i32 : i32
  }
  func.func @transform_5(%arg0: i32) -> (i32, i32, i32) {
    %c0_i32 = arith.constant 0 : i32
    %c0_i32_0 = arith.constant 0 : i32
    %c0_i32_1 = arith.constant 0 : i32
    return %arg0, %c0_i32, %c0_i32_0 : i32, i32, i32
  }
}

</mosaic_0001>

<llo_original>
// kernel: tpu_custom_call.1
$region0: #{tpu_custom_call.1}
  #allocation0 [shape = 'u32[]', space=smem, size = 0x4, offset = 0x4, fixed_abs, tag = 'smem constant byte address 0x4 - core index']
  #allocation1 [shape = 'u32[144,128]{1,0:T(1,128)}', space=vmem, size = 0x12000, scoped, tag = 'internal scratch']
  #allocation2 [shape = 'f32[1]{0:T(128)S(6)}', space=smem, size = 0x200, scoped, tag = 'scoped memory for tpu_custom_call.1']
  %s0 = inlined_call_operand.hbm [shape: bf16[2,32,256], index: 0, kind: input, shape index: {}, may-alias: {0,5}]
  %s1 = inlined_call_operand.vmem [shape: f32[32,2], index: 1, kind: input, shape index: {}]
  %s2 = inlined_call_operand.vmem [shape: f32[2,32], index: 2, kind: input, shape index: {}]
  %s3 = inlined_call_operand.hbm [shape: bf16[512,256], index: 3, kind: input, shape index: {}]
  %s4 = inlined_call_operand.<no memory space> [shape: f32[1], index: 4, kind: input, shape index: {}]
  %s5 = inlined_call_operand.hbm [shape: bf16[2,32,256], index: 5, kind: output, shape index: {}, may-alias: {0,5}]
  %s6 = sld [smem:[#allocation0]]
  $region38: #{tpu_custom_call.1} parent=0
    _
  %s8 = ssub.s32 1, %s6
  %s9 = scalar_select 0, %s8, %s6
  %10 = sst [smem:[#allocation2]] %s4
  $region1: #{tpu_custom_call.1} parent=0
    #allocation3 [shape = 'u8[32768]{0}', space=vmem, size = 0x8000, scoped, tag = 'input window, operand 0, single buffered']
    #allocation4 [shape = 's32[1]{0}', space=sflag, size = 0x4, scoped, tag = 'scoped memory for tpu_custom_call.1']
    #allocation5 [shape = 's32[1]{0}', space=sflag, size = 0x4, scoped, tag = 'scoped memory for tpu_custom_call.1']
    #allocation6 [shape = 'u8[262144]{0}', space=vmem, size = 0x40000, scoped, tag = 'input window, operand 3, single buffered']
    #allocation7 [shape = 's32[1]{0}', space=sflag, size = 0x4, scoped, tag = 'scoped memory for tpu_custom_call.1']
    #allocation8 [shape = 'u8[32768]{0}', space=vmem, size = 0x8000, scoped, tag = 'output window, operand 0, single buffered']
    %11 = vsyncpa [#allocation4], 0
    %12 = vsyncpa [#allocation7], 0
    %13 = vsyncpa [#allocation5], 0
    // Predicated region
    $region2: #{tpu_custom_call.1} parent=1 // pred_check
      _
    $region3: #{tpu_custom_call.1} parent=1 // pred_check_branch
      %15 = sbr.rel (0) target = $region5
    $region4: #{tpu_custom_call.1} parent=1 // pred_region
      %s17 = ssub.s32 1024, 1024
      %18 = vsyncadd [#allocation4], %s17
      %s19 = sshll.u32 [#allocation3], 4
      %s20 = int_to_ptr.vmem [resolvable:$true] %s19
      %25 = dma.hbm_to_vmem [thread:$0]  %s0, 1024, %s20, [#allocation4], 128, 128, 8
    $region5: #{tpu_custom_call.1} parent=1 // pred_fallthru
      _
    // Predicated region
    $region6: #{tpu_custom_call.1} parent=1 // pred_check
      _
    $region7: #{tpu_custom_call.1} parent=1 // pred_check_branch
      %27 = sbr.rel (0) target = $region9
    $region8: #{tpu_custom_call.1} parent=1 // pred_region
      _
    $region9: #{tpu_custom_call.1} parent=1 // pred_fallthru
      _
    // Predicated region
    $region10: #{tpu_custom_call.1} parent=1 // pred_check
      _
    $region11: #{tpu_custom_call.1} parent=1 // pred_check_branch
      %29 = sbr.rel (0) target = $region13
    $region12: #{tpu_custom_call.1} parent=1 // pred_region
      _
    $region13: #{tpu_custom_call.1} parent=1 // pred_fallthru
      _
    // Predicated region
    $region14: #{tpu_custom_call.1} parent=1 // pred_check
      _
    $region15: #{tpu_custom_call.1} parent=1 // pred_check_branch
      %31 = sbr.rel (0) target = $region17
    $region16: #{tpu_custom_call.1} parent=1 // pred_region
      %s33 = ssub.s32 8192, 8192
      %34 = vsyncadd [#allocation7], %s33
      %s35 = sshll.u32 [#allocation6], 4
      %s36 = int_to_ptr.vmem [resolvable:$true] %s35
      %41 = dma.hbm_to_vmem [thread:$0]  %s3, 8192, %s36, [#allocation7], 128, 128, 8
    $region17: #{tpu_custom_call.1} parent=1 // pred_fallthru
      _
    // Predicated region
    $region18: #{tpu_custom_call.1} parent=1 // pred_check
      _
    $region19: #{tpu_custom_call.1} parent=1 // pred_check_branch
      %43 = sbr.rel (0) target = $region21
    $region20: #{tpu_custom_call.1} parent=1 // pred_region
      _
    $region21: #{tpu_custom_call.1} parent=1 // pred_fallthru
      _
    // Predicated region
    $region22: #{tpu_custom_call.1} parent=1 // pred_check
      _
    $region23: #{tpu_custom_call.1} parent=1 // pred_check_branch
      %45 = sbr.rel (0) target = $region25
    $region24: #{tpu_custom_call.1} parent=1 // pred_region
      %46 = dma.done [#allocation4], 1024
    $region25: #{tpu_custom_call.1} parent=1 // pred_fallthru
      _
    // Predicated region
    $region26: #{tpu_custom_call.1} parent=1 // pred_check
      _
    $region27: #{tpu_custom_call.1} parent=1 // pred_check_branch
      %48 = sbr.rel (0) target = $region29
    $region28: #{tpu_custom_call.1} parent=1 // pred_region
      %49 = dma.done [#allocation7], 8192
    $region29: #{tpu_custom_call.1} parent=1 // pred_fallthru
      _
    %v50 = vld [vmem:[#allocation3] sm:$0xff]
    %v51 = vld [vmem:[#allocation3 + $0x8] sm:$0xff]
    %v52 = vld [vmem:[#allocation3 + $0x10] sm:$0xff]
    %v53 = vld [vmem:[#allocation3 + $0x18] sm:$0xff]
    %v54 = vld [vmem:[#allocation3 + $0x20] sm:$0xff]
    %v55 = vld [vmem:[#allocation3 + $0x28] sm:$0xff]
    %v56 = vld [vmem:[#allocation3 + $0x30] sm:$0xff]
    %v57 = vld [vmem:[#allocation3 + $0x38] sm:$0xff]
    %v58 = vunpack.c.l.bf16 %v50
    %v59 = vunpack.c.h.bf16 %v50
    %v60 = vunpack.c.l.bf16 %v51
    %v61 = vunpack.c.h.bf16 %v51
    %v62 = vunpack.c.l.bf16 %v52
    %v63 = vunpack.c.h.bf16 %v52
    %v64 = vunpack.c.l.bf16 %v53
    %v65 = vunpack.c.h.bf16 %v53
    %v66 = vunpack.c.l.bf16 %v54
    %v67 = vunpack.c.h.bf16 %v54
    %v68 = vunpack.c.l.bf16 %v55
    %v69 = vunpack.c.h.bf16 %v55
    %v70 = vunpack.c.l.bf16 %v56
    %v71 = vunpack.c.h.bf16 %v56
    %v72 = vunpack.c.l.bf16 %v57
    %v73 = vunpack.c.h.bf16 %v57
    %v74 = vmax.f32 %v58, %v59
    %75 = vmax.xlane.f32.xlu0 %v74
    %v76 = vpop.xlane.xlu0 %75
    %v77 = vmax.f32 %v60, %v61
    %78 = vmax.xlane.f32.xlu0 %v77
    %v79 = vpop.xlane.xlu0 %78
    %v80 = vmax.f32 %v62, %v63
    %81 = vmax.xlane.f32.xlu0 %v80
    %v82 = vpop.xlane.xlu0 %81
    %v83 = vmax.f32 %v64, %v65
    %84 = vmax.xlane.f32.xlu0 %v83
    %v85 = vpop.xlane.xlu0 %84
    %v86 = vmax.f32 %v66, %v67
    %87 = vmax.xlane.f32.xlu0 %v86
    %v88 = vpop.xlane.xlu0 %87
    %v89 = vmax.f32 %v68, %v69
    %90 = vmax.xlane.f32.xlu0 %v89
    %v91 = vpop.xlane.xlu0 %90
    %v92 = vmax.f32 %v70, %v71
    %93 = vmax.xlane.f32.xlu0 %v92
    %v94 = vpop.xlane.xlu0 %93
    %v95 = vmax.f32 %v72, %v73
    %96 = vmax.xlane.f32.xlu0 %v95
    %v97 = vpop.xlane.xlu0 %96
    %v98 = vadd.f32 %v58, %v59
    %99 = vadd.xlane.f32.xlu0 %v98
    %v100 = vpop.xlane.xlu0 %99
    %v101 = vadd.f32 %v60, %v61
    %102 = vadd.xlane.f32.xlu0 %v101
    %v103 = vpop.xlane.xlu0 %102
    %v104 = vadd.f32 %v62, %v63
    %105 = vadd.xlane.f32.xlu0 %v104
    %v106 = vpop.xlane.xlu0 %105
    %v107 = vadd.f32 %v64, %v65
    %108 = vadd.xlane.f32.xlu0 %v107
    %v109 = vpop.xlane.xlu0 %108
    %v110 = vadd.f32 %v66, %v67
    %111 = vadd.xlane.f32.xlu0 %v110
    %v112 = vpop.xlane.xlu0 %111
    %v113 = vadd.f32 %v68, %v69
    %114 = vadd.xlane.f32.xlu0 %v113
    %v115 = vpop.xlane.xlu0 %114
    %v116 = vadd.f32 %v70, %v71
    %117 = vadd.xlane.f32.xlu0 %v116
    %v118 = vpop.xlane.xlu0 %117
    %v119 = vadd.f32 %v72, %v73
    %120 = vadd.xlane.f32.xlu0 %v119
    %v121 = vpop.xlane.xlu0 %120
    %v122 = vmul.f32 %v100, 0.00390625
    %v123 = vmul.f32 %v103, 0.00390625
    %v124 = vmul.f32 %v106, 0.00390625
    %v125 = vmul.f32 %v109, 0.00390625
    %v126 = vmul.f32 %v112, 0.00390625
    %v127 = vmul.f32 %v115, 0.00390625
    %v128 = vmul.f32 %v118, 0.00390625
    %v129 = vmul.f32 %v121, 0.00390625
    %v138 = vlaneseq
    %v139 = vand.u32 %v138, 127
    %v140 = vlaneseq
    %v141 = vshrl.u32 %v140, 7
    %v142 = vsub.s32 %v139, %v141
    %v143 = vrot.slane %v76, %v142
    %v144 = vadd.s32 %v139, 4294967288
    %v145 = vlaneseq
    %v146 = vshrl.u32 %v145, 7
    %v147 = vsub.s32 %v144, %v146
    %v148 = vrot.slane %v79, %v147
    %vm149 = vcmask 130112
    %v150 = vsel %vm149, %v148, %v143
    %v151 = vadd.s32 %v139, 4294967280
    %v152 = vlaneseq
    %v153 = vshrl.u32 %v152, 7
    %v154 = vsub.s32 %v151, %v153
    %v155 = vrot.slane %v82, %v154
    %vm156 = vcmask 195712
    %v157 = vsel %vm156, %v155, %v150
    %v158 = vadd.s32 %v139, 4294967272
    %v159 = vlaneseq
    %v160 = vshrl.u32 %v159, 7
    %v161 = vsub.s32 %v158, %v160
    %v162 = vrot.slane %v85, %v161
    %vm163 = vcmask 261312
    %v164 = vsel %vm163, %v162, %v157
    %v165 = vlaneseq
    %v166 = vshrl.u32 %v165, 7
    %v167 = vsub.s32 %v139, %v166
    %v168 = vrot.slane %v88, %v167
    %v169 = vlaneseq
    %v170 = vshrl.u32 %v169, 7
    %v171 = vsub.s32 %v144, %v170
    %v172 = vrot.slane %v91, %v171
    %v173 = vsel %vm149, %v172, %v168
    %v174 = vlaneseq
    %v175 = vshrl.u32 %v174, 7
    %v176 = vsub.s32 %v151, %v175
    %v177 = vrot.slane %v94, %v176
    %v178 = vsel %vm156, %v177, %v173
    %v179 = vlaneseq
    %v180 = vshrl.u32 %v179, 7
    %v181 = vsub.s32 %v158, %v180
    %v182 = vrot.slane %v97, %v181
    %v183 = vsel %vm163, %v182, %v178
    %vm184 = vcmask 1041409
    %v185 = vsel %vm184, %v183, %v164
    %v195 = vlaneseq
    %v196 = vshrl.u32 %v195, 7
    %v197 = vsub.s32 %v139, %v196
    %v198 = vrot.slane %v122, %v197
    %v199 = vlaneseq
    %v200 = vshrl.u32 %v199, 7
    %v201 = vsub.s32 %v144, %v200
    %v202 = vrot.slane %v123, %v201
    %v203 = vsel %vm149, %v202, %v198
    %v204 = vlaneseq
    %v205 = vshrl.u32 %v204, 7
    %v206 = vsub.s32 %v151, %v205
    %v207 = vrot.slane %v124, %v206
    %v208 = vsel %vm156, %v207, %v203
    %v209 = vlaneseq
    %v210 = vshrl.u32 %v209, 7
    %v211 = vsub.s32 %v158, %v210
    %v212 = vrot.slane %v125, %v211
    %v213 = vsel %vm163, %v212, %v208
    %v214 = vlaneseq
    %v215 = vshrl.u32 %v214, 7
    %v216 = vsub.s32 %v139, %v215
    %v217 = vrot.slane %v126, %v216
    %v218 = vlaneseq
    %v219 = vshrl.u32 %v218, 7
    %v220 = vsub.s32 %v144, %v219
    %v221 = vrot.slane %v127, %v220
    %v222 = vsel %vm149, %v221, %v217
    %v223 = vlaneseq
    %v224 = vshrl.u32 %v223, 7
    %v225 = vsub.s32 %v151, %v224
    %v226 = vrot.slane %v128, %v225
    %v227 = vsel %vm156, %v226, %v222
    %v228 = vlaneseq
    %v229 = vshrl.u32 %v228, 7
    %v230 = vsub.s32 %v158, %v229
    %v231 = vrot.slane %v129, %v230
    %v232 = vsel %vm163, %v231, %v227
    %vm233 = vcmask 1043459
    %v234 = vsel %vm233, %v232, %v213
    %vm236 = vcmask 1041408
    %v237 = vsel %vm236, %v185, %v234
    %v238 = vld [vmem:[%s1] sm:$0xff]
    %v239 = vld [vmem:[%s1 + $0x8] sm:$0xff]
    %v240 = vld [vmem:[%s1 + $0x10] sm:$0xff]
    %v241 = vld [vmem:[%s1 + $0x18] sm:$0xff]
    %v242 = vld [vmem:[%s2] sm:$0x3]
    %v243 = vlaneseq
    %v244 = vshrl.u32 %v243, 7
    %v245 = vsub.s32 0, %v244
    %v246 = vrot.slane %v237, %v245
    %248 = vbcast.lane.b32.xlu0 %v246, 256
    %v249 = vpop.permute.xlu0 %248
    %s251 = sor.u32 256, 8
    %252 = vbcast.lane.b32.xlu0 %v246, %s251
    %v253 = vpop.permute.xlu0 %252
    %s255 = sor.u32 256, 16
    %256 = vbcast.lane.b32.xlu0 %v246, %s255
    %v257 = vpop.permute.xlu0 %256
    %s259 = sor.u32 256, 24
    %260 = vbcast.lane.b32.xlu0 %v246, %s259
    %v261 = vpop.permute.xlu0 %260
    %v262 = vlaneseq
    %v263 = vshrl.u32 %v262, 7
    %v264 = vsub.s32 1, %v263
    %v265 = vrot.slane %v237, %v264
    %267 = vbcast.lane.b32.xlu0 %v265, 256
    %v268 = vpop.permute.xlu0 %267
    %s270 = sor.u32 256, 8
    %271 = vbcast.lane.b32.xlu0 %v265, %s270
    %v272 = vpop.permute.xlu0 %271
    %s274 = sor.u32 256, 16
    %275 = vbcast.lane.b32.xlu0 %v265, %s274
    %v276 = vpop.permute.xlu0 %275
    %s278 = sor.u32 256, 24
    %279 = vbcast.lane.b32.xlu0 %v265, %s278
    %v280 = vpop.permute.xlu0 %279
    %v281 = vlaneseq
    %v282 = vshrl.u32 %v281, 7
    %v283 = vsub.s32 2, %v282
    %v284 = vrot.slane %v237, %v283
    %286 = vbcast.lane.b32.xlu0 %v284, 256
    %v287 = vpop.permute.xlu0 %286
    %s289 = sor.u32 256, 8
    %290 = vbcast.lane.b32.xlu0 %v284, %s289
    %v291 = vpop.permute.xlu0 %290
    %s293 = sor.u32 256, 16
    %294 = vbcast.lane.b32.xlu0 %v284, %s293
    %v295 = vpop.permute.xlu0 %294
    %s297 = sor.u32 256, 24
    %298 = vbcast.lane.b32.xlu0 %v284, %s297
    %v299 = vpop.permute.xlu0 %298
    %v300 = vlaneseq
    %v301 = vshrl.u32 %v300, 7
    %v302 = vsub.s32 3, %v301
    %v303 = vrot.slane %v237, %v302
    %305 = vbcast.lane.b32.xlu0 %v303, 256
    %v306 = vpop.permute.xlu0 %305
    %s308 = sor.u32 256, 8
    %309 = vbcast.lane.b32.xlu0 %v303, %s308
    %v310 = vpop.permute.xlu0 %309
    %s312 = sor.u32 256, 16
    %313 = vbcast.lane.b32.xlu0 %v303, %s312
    %v314 = vpop.permute.xlu0 %313
    %s316 = sor.u32 256, 24
    %317 = vbcast.lane.b32.xlu0 %v303, %s316
    %v318 = vpop.permute.xlu0 %317
    %v319 = vmul.f32 %v249, %v238
    %v320 = vmul.f32 %v253, %v239
    %v321 = vmul.f32 %v257, %v240
    %v322 = vmul.f32 %v261, %v241
    %v323 = vmul.f32 %v268, %v238
    %v324 = vmul.f32 %v272, %v239
    %v325 = vmul.f32 %v276, %v240
    %v326 = vmul.f32 %v280, %v241
    %v327 = vmul.f32 %v287, %v238
    %v328 = vmul.f32 %v291, %v239
    %v329 = vmul.f32 %v295, %v240
    %v330 = vmul.f32 %v299, %v241
    %v331 = vmul.f32 %v306, %v238
    %v332 = vmul.f32 %v310, %v239
    %v333 = vmul.f32 %v314, %v240
    %v334 = vmul.f32 %v318, %v241
    %vm335 = vcmask 15360
    %v336 = vsel %vm335, %v319, 0.0
    %v337 = vsel %vm335, %v320, 0.0
    %v338 = vadd.f32 %v336, %v337
    %v339 = vsel %vm335, %v321, 0.0
    %v340 = vadd.f32 %v338, %v339
    %v341 = vsel %vm335, %v322, 0.0
    %v342 = vadd.f32 %v340, %v341
    %v343 = vrot.slane %v342, 4
    %v344 = vadd.f32 %v342, %v343
    %v345 = vrot.slane %v344, 2
    %v346 = vadd.f32 %v344, %v345
    %v347 = vrot.slane %v346, 1
    %v348 = vadd.f32 %v346, %v347
    %v349 = vsel %vm335, %v323, 0.0
    %v350 = vsel %vm335, %v324, 0.0
    %v351 = vadd.f32 %v349, %v350
    %v352 = vsel %vm335, %v325, 0.0
    %v353 = vadd.f32 %v351, %v352
    %v354 = vsel %vm335, %v326, 0.0
    %v355 = vadd.f32 %v353, %v354
    %v356 = vrot.slane %v355, 4
    %v357 = vadd.f32 %v355, %v356
    %v358 = vrot.slane %v357, 2
    %v359 = vadd.f32 %v357, %v358
    %v360 = vrot.slane %v359, 1
    %v361 = vadd.f32 %v359, %v360
    %v362 = vsel %vm335, %v327, 0.0
    %v363 = vsel %vm335, %v328, 0.0
    %v364 = vadd.f32 %v362, %v363
    %v365 = vsel %vm335, %v329, 0.0
    %v366 = vadd.f32 %v364, %v365
    %v367 = vsel %vm335, %v330, 0.0
    %v368 = vadd.f32 %v366, %v367
    %v369 = vrot.slane %v368, 4
    %v370 = vadd.f32 %v368, %v369
    %v371 = vrot.slane %v370, 2
    %v372 = vadd.f32 %v370, %v371
    %v373 = vrot.slane %v372, 1
    %v374 = vadd.f32 %v372, %v373
    %v375 = vsel %vm335, %v331, 0.0
    %v376 = vsel %vm335, %v332, 0.0
    %v377 = vadd.f32 %v375, %v376
    %v378 = vsel %vm335, %v333, 0.0
    %v379 = vadd.f32 %v377, %v378
    %v380 = vsel %vm335, %v334, 0.0
    %v381 = vadd.f32 %v379, %v380
    %v382 = vrot.slane %v381, 4
    %v383 = vadd.f32 %v381, %v382
    %v384 = vrot.slane %v383, 2
    %v385 = vadd.f32 %v383, %v384
    %v386 = vrot.slane %v385, 1
    %v387 = vadd.f32 %v385, %v386
    %v388 = vmax.f32 %v348, 0.0
    %v389 = vmax.f32 %v361, 0.0
    %v390 = vmax.f32 %v374, 0.0
    %v391 = vmax.f32 %v387, 0.0
    %393 = vbcast.lane.b32.xlu0 %v388, 256
    %v394 = vpop.permute.xlu0 %393
    %396 = vbcast.lane.b32.xlu0 %v389, 256
    %v397 = vpop.permute.xlu0 %396
    %399 = vbcast.lane.b32.xlu0 %v390, 256
    %v400 = vpop.permute.xlu0 %399
    %402 = vbcast.lane.b32.xlu0 %v391, 256
    %v403 = vpop.permute.xlu0 %402
    %v404 = vmul.f32 %v394, %v242
    %v405 = vmul.f32 %v397, %v242
    %v406 = vmul.f32 %v400, %v242
    %v407 = vmul.f32 %v403, %v242
    %vm408 = vcmask 254976
    %v409 = vsel %vm408, %v404, 0.0
    %v410 = vrot.slane %v409, 4
    %v411 = vadd.f32 %v409, %v410
    %v412 = vrot.slane %v411, 2
    %v413 = vadd.f32 %v411, %v412
    %v414 = vrot.slane %v413, 1
    %v415 = vadd.f32 %v413, %v414
    %v416 = vsel %vm408, %v405, 0.0
    %v417 = vrot.slane %v416, 4
    %v418 = vadd.f32 %v416, %v417
    %v419 = vrot.slane %v418, 2
    %v420 = vadd.f32 %v418, %v419
    %v421 = vrot.slane %v420, 1
    %v422 = vadd.f32 %v420, %v421
    %v423 = vsel %vm408, %v406, 0.0
    %v424 = vrot.slane %v423, 4
    %v425 = vadd.f32 %v423, %v424
    %v426 = vrot.slane %v425, 2
    %v427 = vadd.f32 %v425, %v426
    %v428 = vrot.slane %v427, 1
    %v429 = vadd.f32 %v427, %v428
    %v430 = vsel %vm408, %v407, 0.0
    %v431 = vrot.slane %v430, 4
    %v432 = vadd.f32 %v430, %v431
    %v433 = vrot.slane %v432, 2
    %v434 = vadd.f32 %v432, %v433
    %v435 = vrot.slane %v434, 1
    %v436 = vadd.f32 %v434, %v435
    %v437 = vadd.f32 %v415, %v429
    %v438 = vadd.f32 %v422, %v436
    %v439 = vsub.f32 0.0, %v437
    %v440 = vsub.f32 0.0, %v438
    %v441 = vmul.f32 %v439, 1.442695
    %v442 = vpow.pop %v441
    %v443 = vmul.f32 %v440, 1.442695
    %v444 = vpow.pop %v443
    %v445 = vadd.f32 %v442, 1.0
    %v446 = vadd.f32 %v444, 1.0
    %v447 = vrcp.pop %v445
    %v448 = vrcp.pop %v446
    %450 = vbcast.lane.b32.xlu0 %v447, 256
    %v451 = vpop.permute.xlu0 %450
    %s453 = sor.u32 256, 8
    %454 = vbcast.lane.b32.xlu0 %v447, %s453
    %v455 = vpop.permute.xlu0 %454
    %s457 = sor.u32 256, 16
    %458 = vbcast.lane.b32.xlu0 %v447, %s457
    %v459 = vpop.permute.xlu0 %458
    %s461 = sor.u32 256, 24
    %462 = vbcast.lane.b32.xlu0 %v447, %s461
    %v463 = vpop.permute.xlu0 %462
    %465 = vbcast.lane.b32.xlu0 %v448, 256
    %v466 = vpop.permute.xlu0 %465
    %s468 = sor.u32 256, 8
    %469 = vbcast.lane.b32.xlu0 %v448, %s468
    %v470 = vpop.permute.xlu0 %469
    %s472 = sor.u32 256, 16
    %473 = vbcast.lane.b32.xlu0 %v448, %s472
    %v474 = vpop.permute.xlu0 %473
    %s476 = sor.u32 256, 24
    %477 = vbcast.lane.b32.xlu0 %v448, %s476
    %v478 = vpop.permute.xlu0 %477
    %v479 = vmul.f32 %v58, %v451
    %v480 = vmul.f32 %v59, %v451
    %v481 = vmul.f32 %v60, %v455
    %v482 = vmul.f32 %v61, %v455
    %v483 = vmul.f32 %v62, %v459
    %v484 = vmul.f32 %v63, %v459
    %v485 = vmul.f32 %v64, %v463
    %v486 = vmul.f32 %v65, %v463
    %v487 = vmul.f32 %v66, %v466
    %v488 = vmul.f32 %v67, %v466
    %v489 = vmul.f32 %v68, %v470
    %v490 = vmul.f32 %v69, %v470
    %v491 = vmul.f32 %v70, %v474
    %v492 = vmul.f32 %v71, %v474
    %v493 = vmul.f32 %v72, %v478
    %v494 = vmul.f32 %v73, %v478
    %v495 = vmax.f32 %v479, %v481
    %v496 = vmax.f32 %v495, %v483
    %v497 = vmax.f32 %v496, %v485
    %v498 = vrot.slane %v497, 4
    %v499 = vmax.f32 %v497, %v498
    %v500 = vrot.slane %v499, 2
    %v501 = vmax.f32 %v499, %v500
    %v502 = vrot.slane %v501, 1
    %v503 = vmax.f32 %v501, %v502
    %v504 = vmax.f32 %v480, %v482
    %v505 = vmax.f32 %v504, %v484
    %v506 = vmax.f32 %v505, %v486
    %v507 = vrot.slane %v506, 4
    %v508 = vmax.f32 %v506, %v507
    %v509 = vrot.slane %v508, 2
    %v510 = vmax.f32 %v508, %v509
    %v511 = vrot.slane %v510, 1
    %v512 = vmax.f32 %v510, %v511
    %v513 = vmax.f32 %v487, %v489
    %v514 = vmax.f32 %v513, %v491
    %v515 = vmax.f32 %v514, %v493
    %v516 = vrot.slane %v515, 4
    %v517 = vmax.f32 %v515, %v516
    %v518 = vrot.slane %v517, 2
    %v519 = vmax.f32 %v517, %v518
    %v520 = vrot.slane %v519, 1
    %v521 = vmax.f32 %v519, %v520
    %v522 = vmax.f32 %v488, %v490
    %v523 = vmax.f32 %v522, %v492
    %v524 = vmax.f32 %v523, %v494
    %v525 = vrot.slane %v524, 4
    %v526 = vmax.f32 %v524, %v525
    %v527 = vrot.slane %v526, 2
    %v528 = vmax.f32 %v526, %v527
    %v529 = vrot.slane %v528, 1
    %v530 = vmax.f32 %v528, %v529
    %v531 = vadd.f32 %v479, %v481
    %v532 = vadd.f32 %v531, %v483
    %v533 = vadd.f32 %v532, %v485
    %v534 = vrot.slane %v533, 4
    %v535 = vadd.f32 %v533, %v534
    %v536 = vrot.slane %v535, 2
    %v537 = vadd.f32 %v535, %v536
    %v538 = vrot.slane %v537, 1
    %v539 = vadd.f32 %v537, %v538
    %v540 = vadd.f32 %v480, %v482
    %v541 = vadd.f32 %v540, %v484
    %v542 = vadd.f32 %v541, %v486
    %v543 = vrot.slane %v542, 4
    %v544 = vadd.f32 %v542, %v543
    %v545 = vrot.slane %v544, 2
    %v546 = vadd.f32 %v544, %v545
    %v547 = vrot.slane %v546, 1
    %v548 = vadd.f32 %v546, %v547
    %v549 = vadd.f32 %v487, %v489
    %v550 = vadd.f32 %v549, %v491
    %v551 = vadd.f32 %v550, %v493
    %v552 = vrot.slane %v551, 4
    %v553 = vadd.f32 %v551, %v552
    %v554 = vrot.slane %v553, 2
    %v555 = vadd.f32 %v553, %v554
    %v556 = vrot.slane %v555, 1
    %v557 = vadd.f32 %v555, %v556
    %v558 = vadd.f32 %v488, %v490
    %v559 = vadd.f32 %v558, %v492
    %v560 = vadd.f32 %v559, %v494
    %v561 = vrot.slane %v560, 4
    %v562 = vadd.f32 %v560, %v561
    %v563 = vrot.slane %v562, 2
    %v564 = vadd.f32 %v562, %v563
    %v565 = vrot.slane %v564, 1
    %v566 = vadd.f32 %v564, %v565
    %v567 = vmul.f32 %v539, 0.03125
    %v568 = vmul.f32 %v548, 0.03125
    %v569 = vmul.f32 %v557, 0.03125
    %v570 = vmul.f32 %v566, 0.03125
    %v575 = vsel %vm184, %v521, %v503
    %v576 = vsel %vm184, %v530, %v512
    %v583 = vsel %vm184, %v569, %v567
    %v584 = vsel %vm184, %v570, %v568
    %v587 = vpack.c.bf16 %v575, %v575
    %v588 = vpack.c.bf16 %v576, %v576
    %v589 = vpack.c.bf16 %v583, %v583
    %v590 = vpack.c.bf16 %v584, %v584
    %v591 = vld [vmem:[#allocation6] sm:$0xff]
    %v592 = vld [vmem:[#allocation6 + $0x8] sm:$0xff]
    %v593 = vld [vmem:[#allocation6 + $0x10] sm:$0xff]
    %v594 = vld [vmem:[#allocation6 + $0x18] sm:$0xff]
    %v595 = vld [vmem:[#allocation6 + $0x20] sm:$0xff]
    %v596 = vld [vmem:[#allocation6 + $0x28] sm:$0xff]
    %v597 = vld [vmem:[#allocation6 + $0x30] sm:$0xff]
    %v598 = vld [vmem:[#allocation6 + $0x38] sm:$0xff]
    %v599 = vld [vmem:[#allocation6 + $0x40] sm:$0xff]
    %v600 = vld [vmem:[#allocation6 + $0x48] sm:$0xff]
    %v601 = vld [vmem:[#allocation6 + $0x50] sm:$0xff]
    %v602 = vld [vmem:[#allocation6 + $0x58] sm:$0xff]
    %v603 = vld [vmem:[#allocation6 + $0x60] sm:$0xff]
    %v604 = vld [vmem:[#allocation6 + $0x68] sm:$0xff]
    %v605 = vld [vmem:[#allocation6 + $0x70] sm:$0xff]
    %v606 = vld [vmem:[#allocation6 + $0x78] sm:$0xff]
    %v607 = vld [vmem:[#allocation6 + $0x80] sm:$0xff]
    %v608 = vld [vmem:[#allocation6 + $0x88] sm:$0xff]
    %v609 = vld [vmem:[#allocation6 + $0x90] sm:$0xff]
    %v610 = vld [vmem:[#allocation6 + $0x98] sm:$0xff]
    %v611 = vld [vmem:[#allocation6 + $0xa0] sm:$0xff]
    %v612 = vld [vmem:[#allocation6 + $0xa8] sm:$0xff]
    %v613 = vld [vmem:[#allocation6 + $0xb0] sm:$0xff]
    %v614 = vld [vmem:[#allocation6 + $0xb8] sm:$0xff]
    %v615 = vld [vmem:[#allocation6 + $0xc0] sm:$0xff]
    %v616 = vld [vmem:[#allocation6 + $0xc8] sm:$0xff]
    %v617 = vld [vmem:[#allocation6 + $0xd0] sm:$0xff]
    %v618 = vld [vmem:[#allocation6 + $0xd8] sm:$0xff]
    %v619 = vld [vmem:[#allocation6 + $0xe0] sm:$0xff]
    %v620 = vld [vmem:[#allocation6 + $0xe8] sm:$0xff]
    %v621 = vld [vmem:[#allocation6 + $0xf0] sm:$0xff]
    %v622 = vld [vmem:[#allocation6 + $0xf8] sm:$0xff]
    %v623 = vld [vmem:[#allocation6 + $0x100] sm:$0xff]
    %v624 = vld [vmem:[#allocation6 + $0x108] sm:$0xff]
    %v625 = vld [vmem:[#allocation6 + $0x110] sm:$0xff]
    %v626 = vld [vmem:[#allocation6 + $0x118] sm:$0xff]
    %v627 = vld [vmem:[#allocation6 + $0x120] sm:$0xff]
    %v628 = vld [vmem:[#allocation6 + $0x128] sm:$0xff]
    %v629 = vld [vmem:[#allocation6 + $0x130] sm:$0xff]
    %v630 = vld [vmem:[#allocation6 + $0x138] sm:$0xff]
    %v631 = vld [vmem:[#allocation6 + $0x140] sm:$0xff]
    %v632 = vld [vmem:[#allocation6 + $0x148] sm:$0xff]
    %v633 = vld [vmem:[#allocation6 + $0x150] sm:$0xff]
    %v634 = vld [vmem:[#allocation6 + $0x158] sm:$0xff]
    %v635 = vld [vmem:[#allocation6 + $0x160] sm:$0xff]
    %v636 = vld [vmem:[#allocation6 + $0x168] sm:$0xff]
    %v637 = vld [vmem:[#allocation6 + $0x170] sm:$0xff]
    %v638 = vld [vmem:[#allocation6 + $0x178] sm:$0xff]
    %v639 = vld [vmem:[#allocation6 + $0x180] sm:$0xff]
    %v640 = vld [vmem:[#allocation6 + $0x188] sm:$0xff]
    %v641 = vld [vmem:[#allocation6 + $0x190] sm:$0xff]
    %v642 = vld [vmem:[#allocation6 + $0x198] sm:$0xff]
    %v643 = vld [vmem:[#allocation6 + $0x1a0] sm:$0xff]
    %v644 = vld [vmem:[#allocation6 + $0x1a8] sm:$0xff]
    %v645 = vld [vmem:[#allocation6 + $0x1b0] sm:$0xff]
    %v646 = vld [vmem:[#allocation6 + $0x1b8] sm:$0xff]
    %v647 = vld [vmem:[#allocation6 + $0x1c0] sm:$0xff]
    %v648 = vld [vmem:[#allocation6 + $0x1c8] sm:$0xff]
    %v649 = vld [vmem:[#allocation6 + $0x1d0] sm:$0xff]
    %v650 = vld [vmem:[#allocation6 + $0x1d8] sm:$0xff]
    %v651 = vld [vmem:[#allocation6 + $0x1e0] sm:$0xff]
    %v652 = vld [vmem:[#allocation6 + $0x1e8] sm:$0xff]
    %v653 = vld [vmem:[#allocation6 + $0x1f0] sm:$0xff]
    %v654 = vld [vmem:[#allocation6 + $0x1f8] sm:$0xff]
    %s655 = sld [smem:[#allocation2]]
    %v656 = vstv %s655
    %v721 = vunpack.c.l.b16 %v591
    %v722 = vunpack.c.h.b16 %v591
    %v723 = vunpack.c.l.b16 %v592
    %v724 = vunpack.c.h.b16 %v592
    %v725 = vunpack.c.l.b16 %v593
    %v726 = vunpack.c.h.b16 %v593
    %v727 = vunpack.c.l.b16 %v594
    %v728 = vunpack.c.h.b16 %v594
    %v729 = vunpack.c.l.b16 %v595
    %v730 = vunpack.c.h.b16 %v595
    %v731 = vunpack.c.l.b16 %v596
    %v732 = vunpack.c.h.b16 %v596
    %v733 = vunpack.c.l.b16 %v597
    %v734 = vunpack.c.h.b16 %v597
    %v735 = vunpack.c.l.b16 %v598
    %v736 = vunpack.c.h.b16 %v598
    %v737 = vunpack.c.l.b16 %v599
    %v738 = vunpack.c.h.b16 %v599
    %v739 = vunpack.c.l.b16 %v600
    %v740 = vunpack.c.h.b16 %v600
    %v741 = vunpack.c.l.b16 %v601
    %v742 = vunpack.c.h.b16 %v601
    %v743 = vunpack.c.l.b16 %v602
    %v744 = vunpack.c.h.b16 %v602
    %v745 = vunpack.c.l.b16 %v603
    %v746 = vunpack.c.h.b16 %v603
    %v747 = vunpack.c.l.b16 %v604
    %v748 = vunpack.c.h.b16 %v604
    %v749 = vunpack.c.l.b16 %v605
    %v750 = vunpack.c.h.b16 %v605
    %v751 = vunpack.c.l.b16 %v606
    %v752 = vunpack.c.h.b16 %v606
    %v753 = vunpack.c.l.b16 %v607
    %v754 = vunpack.c.h.b16 %v607
    %v755 = vunpack.c.l.b16 %v608
    %v756 = vunpack.c.h.b16 %v608
    %v757 = vunpack.c.l.b16 %v609
    %v758 = vunpack.c.h.b16 %v609
    %v759 = vunpack.c.l.b16 %v610
    %v760 = vunpack.c.h.b16 %v610
    %v761 = vunpack.c.l.b16 %v611
    %v762 = vunpack.c.h.b16 %v611
    %v763 = vunpack.c.l.b16 %v612
    %v764 = vunpack.c.h.b16 %v612
    %v765 = vunpack.c.l.b16 %v613
    %v766 = vunpack.c.h.b16 %v613
    %v767 = vunpack.c.l.b16 %v614
    %v768 = vunpack.c.h.b16 %v614
    %v769 = vunpack.c.l.b16 %v615
    %v770 = vunpack.c.h.b16 %v615
    %v771 = vunpack.c.l.b16 %v616
    %v772 = vunpack.c.h.b16 %v616
    %v773 = vunpack.c.l.b16 %v617
    %v774 = vunpack.c.h.b16 %v617
    %v775 = vunpack.c.l.b16 %v618
    %v776 = vunpack.c.h.b16 %v618
    %v777 = vunpack.c.l.b16 %v619
    %v778 = vunpack.c.h.b16 %v619
    %v779 = vunpack.c.l.b16 %v620
    %v780 = vunpack.c.h.b16 %v620
    %v781 = vunpack.c.l.b16 %v621
    %v782 = vunpack.c.h.b16 %v621
    %v783 = vunpack.c.l.b16 %v622
    %v784 = vunpack.c.h.b16 %v622
    %v785 = vunpack.c.l.b16 %v623
    %v786 = vunpack.c.h.b16 %v623
    %v787 = vunpack.c.l.b16 %v624
    %v788 = vunpack.c.h.b16 %v624
    %v789 = vunpack.c.l.b16 %v625
    %v790 = vunpack.c.h.b16 %v625
    %v791 = vunpack.c.l.b16 %v626
    %v792 = vunpack.c.h.b16 %v626
    %v793 = vunpack.c.l.b16 %v627
    %v794 = vunpack.c.h.b16 %v627
    %v795 = vunpack.c.l.b16 %v628
    %v796 = vunpack.c.h.b16 %v628
    %v797 = vunpack.c.l.b16 %v629
    %v798 = vunpack.c.h.b16 %v629
    %v799 = vunpack.c.l.b16 %v630
    %v800 = vunpack.c.h.b16 %v630
    %v801 = vunpack.c.l.b16 %v631
    %v802 = vunpack.c.h.b16 %v631
    %v803 = vunpack.c.l.b16 %v632
    %v804 = vunpack.c.h.b16 %v632
    %v805 = vunpack.c.l.b16 %v633
    %v806 = vunpack.c.h.b16 %v633
    %v807 = vunpack.c.l.b16 %v634
    %v808 = vunpack.c.h.b16 %v634
    %v809 = vunpack.c.l.b16 %v635
    %v810 = vunpack.c.h.b16 %v635
    %v811 = vunpack.c.l.b16 %v636
    %v812 = vunpack.c.h.b16 %v636
    %v813 = vunpack.c.l.b16 %v637
    %v814 = vunpack.c.h.b16 %v637
    %v815 = vunpack.c.l.b16 %v638
    %v816 = vunpack.c.h.b16 %v638
    %v817 = vunpack.c.l.b16 %v639
    %v818 = vunpack.c.h.b16 %v639
    %v819 = vunpack.c.l.b16 %v640
    %v820 = vunpack.c.h.b16 %v640
    %v821 = vunpack.c.l.b16 %v641
    %v822 = vunpack.c.h.b16 %v641
    %v823 = vunpack.c.l.b16 %v642
    %v824 = vunpack.c.h.b16 %v642
    %v825 = vunpack.c.l.b16 %v643
    %v826 = vunpack.c.h.b16 %v643
    %v827 = vunpack.c.l.b16 %v644
    %v828 = vunpack.c.h.b16 %v644
    %v829 = vunpack.c.l.b16 %v645
    %v830 = vunpack.c.h.b16 %v645
    %v831 = vunpack.c.l.b16 %v646
    %v832 = vunpack.c.h.b16 %v646
    %v833 = vunpack.c.l.b16 %v647
    %v834 = vunpack.c.h.b16 %v647
    %v835 = vunpack.c.l.b16 %v648
    %v836 = vunpack.c.h.b16 %v648
    %v837 = vunpack.c.l.b16 %v649
    %v838 = vunpack.c.h.b16 %v649
    %v839 = vunpack.c.l.b16 %v650
    %v840 = vunpack.c.h.b16 %v650
    %v841 = vunpack.c.l.b16 %v651
    %v842 = vunpack.c.h.b16 %v651
    %v843 = vunpack.c.l.b16 %v652
    %v844 = vunpack.c.h.b16 %v652
    %v845 = vunpack.c.l.b16 %v653
    %v846 = vunpack.c.h.b16 %v653
    %v847 = vunpack.c.l.b16 %v654
    %v848 = vunpack.c.h.b16 %v654
    %v849 = vpack.c.b16 %v723, %v721
    %v850 = vpack.c.b16 %v724, %v722
    %v851 = vpack.c.b16 %v727, %v725
    %v852 = vpack.c.b16 %v728, %v726
    %v853 = vpack.c.b16 %v731, %v729
    %v854 = vpack.c.b16 %v732, %v730
    %v855 = vpack.c.b16 %v735, %v733
    %v856 = vpack.c.b16 %v736, %v734
    %v857 = vpack.c.b16 %v739, %v737
    %v858 = vpack.c.b16 %v740, %v738
    %v859 = vpack.c.b16 %v743, %v741
    %v860 = vpack.c.b16 %v744, %v742
    %v861 = vpack.c.b16 %v747, %v745
    %v862 = vpack.c.b16 %v748, %v746
    %v863 = vpack.c.b16 %v751, %v749
    %v864 = vpack.c.b16 %v752, %v750
    %v865 = vpack.c.b16 %v755, %v753
    %v866 = vpack.c.b16 %v756, %v754
    %v867 = vpack.c.b16 %v759, %v757
    %v868 = vpack.c.b16 %v760, %v758
    %v869 = vpack.c.b16 %v763, %v761
    %v870 = vpack.c.b16 %v764, %v762
    %v871 = vpack.c.b16 %v767, %v765
    %v872 = vpack.c.b16 %v768, %v766
    %v873 = vpack.c.b16 %v771, %v769
    %v874 = vpack.c.b16 %v772, %v770
    %v875 = vpack.c.b16 %v775, %v773
    %v876 = vpack.c.b16 %v776, %v774
    %v877 = vpack.c.b16 %v779, %v777
    %v878 = vpack.c.b16 %v780, %v778
    %v879 = vpack.c.b16 %v783, %v781
    %v880 = vpack.c.b16 %v784, %v782
    %v881 = vpack.c.b16 %v787, %v785
    %v882 = vpack.c.b16 %v788, %v786
    %v883 = vpack.c.b16 %v791, %v789
    %v884 = vpack.c.b16 %v792, %v790
    %v885 = vpack.c.b16 %v795, %v793
    %v886 = vpack.c.b16 %v796, %v794
    %v887 = vpack.c.b16 %v799, %v797
    %v888 = vpack.c.b16 %v800, %v798
    %v889 = vpack.c.b16 %v803, %v801
    %v890 = vpack.c.b16 %v804, %v802
    %v891 = vpack.c.b16 %v807, %v805
    %v892 = vpack.c.b16 %v808, %v806
    %v893 = vpack.c.b16 %v811, %v809
    %v894 = vpack.c.b16 %v812, %v810
    %v895 = vpack.c.b16 %v815, %v813
    %v896 = vpack.c.b16 %v816, %v814
    %v897 = vpack.c.b16 %v819, %v817
    %v898 = vpack.c.b16 %v820, %v818
    %v899 = vpack.c.b16 %v823, %v821
    %v900 = vpack.c.b16 %v824, %v822
    %v901 = vpack.c.b16 %v827, %v825
    %v902 = vpack.c.b16 %v828, %v826
    %v903 = vpack.c.b16 %v831, %v829
    %v904 = vpack.c.b16 %v832, %v830
    %v905 = vpack.c.b16 %v835, %v833
    %v906 = vpack.c.b16 %v836, %v834
    %v907 = vpack.c.b16 %v839, %v837
    %v908 = vpack.c.b16 %v840, %v838
    %v909 = vpack.c.b16 %v843, %v841
    %v910 = vpack.c.b16 %v844, %v842
    %v911 = vpack.c.b16 %v847, %v845
    %v912 = vpack.c.b16 %v848, %v846
    %977 = vmatprep.subr.bf16.mxu0 %v864
    %978 = vmatpush1.bf16.msra.mxu0 %v863
    %979 = vmatprep.subr.bf16.mxu0 %v862
    %980 = vmatpush1.bf16.msra.mxu0 %v861
    %981 = vmatprep.subr.bf16.mxu0 %v860
    %982 = vmatpush1.bf16.msra.mxu0 %v859
    %983 = vmatprep.subr.bf16.mxu0 %v858
    %984 = vmatpush1.bf16.msra.mxu0 %v857
    %985 = vmatprep.subr.bf16.mxu0 %v856
    %986 = vmatpush1.bf16.msra.mxu0 %v855
    %987 = vmatprep.subr.bf16.mxu0 %v854
    %988 = vmatpush1.bf16.msra.mxu0 %v853
    %989 = vmatprep.subr.bf16.mxu0 %v852
    %990 = vmatpush1.bf16.msra.mxu0 %v851
    %991 = vmatprep.subr.bf16.mxu0 %v850
    %992 = vmatpush1.bf16.msra.mxu0 %v849
    %993 = vmatprep.subr.bf16.mxu0 %v880
    %994 = vmatpush2.bf16.msra.mxu0 %v879
    %995 = vmatprep.subr.bf16.mxu0 %v878
    %996 = vmatpush2.bf16.msra.mxu0 %v877
    %997 = vmatprep.subr.bf16.mxu0 %v876
    %998 = vmatpush2.bf16.msra.mxu0 %v875
    %999 = vmatprep.subr.bf16.mxu0 %v874
    %1000 = vmatpush2.bf16.msra.mxu0 %v873
    %1001 = vmatprep.subr.bf16.mxu0 %v872
    %1002 = vmatpush2.bf16.msra.mxu0 %v871
    %1003 = vmatprep.subr.bf16.mxu0 %v870
    %1004 = vmatpush2.bf16.msra.mxu0 %v869
    %1005 = vmatprep.subr.bf16.mxu0 %v868
    %1006 = vmatpush2.bf16.msra.mxu0 %v867
    %1007 = vmatprep.subr.bf16.mxu0 %v866
    %1008 = vmatpush2.bf16.msra.mxu0 %v865
    %1009 = vmatprep.mubr.bf16.mxu0 %v588
    %1010 = vmatmul.mubr.bf16.gmra.mxu0 %v587
    %v1011 = vpop.f32.mrf.mxu0
    %v1012 = vadd.f32 %v656, %v1011
    %v1013 = vpop.f32.mrf.mxu0
    %v1014 = vadd.f32 %v656, %v1013
    %v1015 = vpop.f32.mrf.mxu0
    %v1016 = vpop.f32.mrf.mxu0
    %1017 = vdwg.mxu0
    %1018 = vmatprep.subr.bf16.mxu0 %v896
    %1019 = vmatpush1.bf16.msra.mxu0 %v895
    %1020 = vmatprep.subr.bf16.mxu0 %v894
    %1021 = vmatpush1.bf16.msra.mxu0 %v893
    %1022 = vmatprep.subr.bf16.mxu0 %v892
    %1023 = vmatpush1.bf16.msra.mxu0 %v891
    %1024 = vmatprep.subr.bf16.mxu0 %v890
    %1025 = vmatpush1.bf16.msra.mxu0 %v889
    %1026 = vmatprep.subr.bf16.mxu0 %v888
    %1027 = vmatpush1.bf16.msra.mxu0 %v887
    %1028 = vmatprep.subr.bf16.mxu0 %v886
    %1029 = vmatpush1.bf16.msra.mxu0 %v885
    %1030 = vmatprep.subr.bf16.mxu0 %v884
    %1031 = vmatpush1.bf16.msra.mxu0 %v883
    %1032 = vmatprep.subr.bf16.mxu0 %v882
    %1033 = vmatpush1.bf16.msra.mxu0 %v881
    %1034 = vmatprep.subr.bf16.mxu0 %v912
    %1035 = vmatpush2.bf16.msra.mxu0 %v911
    %1036 = vmatprep.subr.bf16.mxu0 %v910
    %1037 = vmatpush2.bf16.msra.mxu0 %v909
    %1038 = vmatprep.subr.bf16.mxu0 %v908
    %1039 = vmatpush2.bf16.msra.mxu0 %v907
    %1040 = vmatprep.subr.bf16.mxu0 %v906
    %1041 = vmatpush2.bf16.msra.mxu0 %v905
    %1042 = vmatprep.subr.bf16.mxu0 %v904
    %1043 = vmatpush2.bf16.msra.mxu0 %v903
    %1044 = vmatprep.subr.bf16.mxu0 %v902
    %1045 = vmatpush2.bf16.msra.mxu0 %v901
    %1046 = vmatprep.subr.bf16.mxu0 %v900
    %1047 = vmatpush2.bf16.msra.mxu0 %v899
    %1048 = vmatprep.subr.bf16.mxu0 %v898
    %1049 = vmatpush2.bf16.msra.mxu0 %v897
    %1050 = vmatprep.mubr.bf16.mxu0 %v590
    %1051 = vmatmul.mubr.bf16.gmra.mxu0 %v589
    %v1052 = vpop.f32.mrf.mxu0
    %v1053 = vadd.f32 %v1012, %v1052
    %v1054 = vpop.f32.mrf.mxu0
    %v1055 = vadd.f32 %v1014, %v1054
    %v1056 = vpop.f32.mrf.mxu0
    %v1057 = vpop.f32.mrf.mxu0
    %1058 = vdwg.mxu0
    %v1059 = vsub.f32 0.0, %v1053
    %v1060 = vsub.f32 0.0, %v1055
    %v1061 = vmul.f32 %v1059, 1.442695
    %v1062 = vpow.pop %v1061
    %v1063 = vmul.f32 %v1060, 1.442695
    %v1064 = vpow.pop %v1063
    %v1065 = vadd.f32 %v1062, 1.0
    %v1066 = vadd.f32 %v1064, 1.0
    %v1067 = vrcp.pop %v1065
    %v1068 = vrcp.pop %v1066
    %v1071 = vcombine.low %v1067, %v1068
    %v1073 = vunpack.c.l.s4 1966171168
    %v1074 = vunpack.c.0.s8 %v1073
    %v1075 = vlaneseq
    %v1076 = vshrl.u32 %v1075, 7
    %v1077 = vsub.s32 %v1074, %v1076
    %v1078 = vrot.slane %v1071, %v1077
    %v1079 = vcombine.high %v1078, %v1078
    %v1081 = vunpack.c.l.s4 1966171168
    %v1082 = vunpack.c.0.s8 %v1081
    %v1083 = vlaneseq
    %v1084 = vshrl.u32 %v1083, 7
    %v1085 = vsub.s32 %v1082, %v1084
    %v1086 = vrot.slane %v1078, %v1085
    %v1088 = vunpack.c.l.s4 1966171168
    %v1089 = vunpack.c.0.s8 %v1088
    %v1090 = vlaneseq
    %v1091 = vshrl.u32 %v1090, 7
    %v1092 = vsub.s32 %v1089, %v1091
    %v1093 = vrot.slane %v1079, %v1092
    %v1094 = vlaneseq
    %v1095 = vshrl.u32 %v1094, 7
    %v1096 = vsub.s32 0, %v1095
    %v1097 = vrot.slane %v1086, %v1096
    %v1098 = vlaneseq
    %v1099 = vshrl.u32 %v1098, 7
    %v1100 = vsub.s32 1, %v1099
    %v1101 = vrot.slane %v1086, %v1100
    %v1102 = vlaneseq
    %v1103 = vshrl.u32 %v1102, 7
    %v1104 = vsub.s32 0, %v1103
    %v1105 = vrot.slane %v1093, %v1104
    %v1106 = vlaneseq
    %v1107 = vshrl.u32 %v1106, 7
    %v1108 = vsub.s32 1, %v1107
    %v1109 = vrot.slane %v1093, %v1108
    %v1114 = vmul.f32 %v479, %v1097
    %v1115 = vmul.f32 %v480, %v1101
    %v1116 = vmul.f32 %v481, %v1097
    %v1117 = vmul.f32 %v482, %v1101
    %v1118 = vmul.f32 %v483, %v1097
    %v1119 = vmul.f32 %v484, %v1101
    %v1120 = vmul.f32 %v485, %v1097
    %v1121 = vmul.f32 %v486, %v1101
    %v1122 = vmul.f32 %v487, %v1105
    %v1123 = vmul.f32 %v488, %v1109
    %v1124 = vmul.f32 %v489, %v1105
    %v1125 = vmul.f32 %v490, %v1109
    %v1126 = vmul.f32 %v491, %v1105
    %v1127 = vmul.f32 %v492, %v1109
    %v1128 = vmul.f32 %v493, %v1105
    %v1129 = vmul.f32 %v494, %v1109
    %v1130 = vpack.c.bf16 %v1116, %v1114
    %v1131 = vpack.c.bf16 %v1117, %v1115
    %v1132 = vpack.c.bf16 %v1120, %v1118
    %v1133 = vpack.c.bf16 %v1121, %v1119
    %v1134 = vpack.c.bf16 %v1124, %v1122
    %v1135 = vpack.c.bf16 %v1125, %v1123
    %v1136 = vpack.c.bf16 %v1128, %v1126
    %v1137 = vpack.c.bf16 %v1129, %v1127
    %v1146 = vunpack.c.l.b16 %v1130
    %v1147 = vunpack.c.l.b16 %v1131
    %v1148 = vunpack.c.h.b16 %v1130
    %v1149 = vunpack.c.h.b16 %v1131
    %v1150 = vunpack.c.l.b16 %v1132
    %v1151 = vunpack.c.l.b16 %v1133
    %v1152 = vunpack.c.h.b16 %v1132
    %v1153 = vunpack.c.h.b16 %v1133
    %v1154 = vunpack.c.l.b16 %v1134
    %v1155 = vunpack.c.l.b16 %v1135
    %v1156 = vunpack.c.h.b16 %v1134
    %v1157 = vunpack.c.h.b16 %v1135
    %v1158 = vunpack.c.l.b16 %v1136
    %v1159 = vunpack.c.l.b16 %v1137
    %v1160 = vunpack.c.h.b16 %v1136
    %v1161 = vunpack.c.h.b16 %v1137
    %v1162 = vpack.c.b16 %v1147, %v1146
    %v1163 = vpack.c.b16 %v1149, %v1148
    %v1164 = vpack.c.b16 %v1151, %v1150
    %v1165 = vpack.c.b16 %v1153, %v1152
    %v1166 = vpack.c.b16 %v1155, %v1154
    %v1167 = vpack.c.b16 %v1157, %v1156
    %v1168 = vpack.c.b16 %v1159, %v1158
    %v1169 = vpack.c.b16 %v1161, %v1160
    %1178 = vst [vmem:[#allocation8] sm:$0xff] %v1162
    %1179 = vst [vmem:[#allocation8 + $0x8] sm:$0xff] %v1163
    %1180 = vst [vmem:[#allocation8 + $0x10] sm:$0xff] %v1164
    %1181 = vst [vmem:[#allocation8 + $0x18] sm:$0xff] %v1165
    %1182 = vst [vmem:[#allocation8 + $0x20] sm:$0xff] %v1166
    %1183 = vst [vmem:[#allocation8 + $0x28] sm:$0xff] %v1167
    %1184 = vst [vmem:[#allocation8 + $0x30] sm:$0xff] %v1168
    %1185 = vst [vmem:[#allocation8 + $0x38] sm:$0xff] %v1169
    // Predicated region
    $region30: #{tpu_custom_call.1} parent=1 // pred_check
      _
    $region31: #{tpu_custom_call.1} parent=1 // pred_check_branch
      %1187 = sbr.rel (0) target = $region33
    $region32: #{tpu_custom_call.1} parent=1 // pred_region
      %s1189 = ssub.s32 1024, 1024
      %1190 = vsyncadd [#allocation5], %s1189
      %s1191 = sshll.u32 [#allocation8], 4
      %s1192 = int_to_ptr.vmem [resolvable:$true] %s1191
      %1197 = dma.vmem_to_hbm [thread:$0]  %s1192, 1024, %s5, [#allocation5], 128, 128, 8
    $region33: #{tpu_custom_call.1} parent=1 // pred_fallthru
      _
    // Predicated region
    $region34: #{tpu_custom_call.1} parent=1 // pred_check
      _
    $region35: #{tpu_custom_call.1} parent=1 // pred_check_branch
      %1199 = sbr.rel (0) target = $region37
    $region36: #{tpu_custom_call.1} parent=1 // pred_region
      %1200 = dma.done [#allocation5], 1024
    $region37: #{tpu_custom_call.1} parent=1 // pred_fallthru
      _
    %1201 = vsyncpa [#allocation4], 1
    %1202 = vsyncpa [#allocation7], 1
    %1203 = vsyncpa [#allocation5], 1

// kernel: tpu_custom_call.1
$region0: #{tpu_custom_call.1}
  #allocation0 [shape = 'u32[]', space=smem, size = 0x4, offset = 0x4, fixed_abs, tag = 'smem constant byte address 0x4 - core index']
  #allocation1 [shape = 'u32[144,128]{1,0:T(1,128)}', space=vmem, size = 0x12000, scoped, tag = 'internal scratch']
  #allocation2 [shape = 'f32[1]{0:T(128)S(6)}', space=smem, size = 0x200, scoped, tag = 'scoped memory for tpu_custom_call.1']
  %s0 = inlined_call_operand.hbm [shape: bf16[2,32,256], index: 0, kind: input, shape index: {}, may-alias: {0,5}]
  %s1 = inlined_call_operand.vmem [shape: f32[32,2], index: 1, kind: input, shape index: {}]
  %s2 = inlined_call_operand.vmem [shape: f32[2,32], index: 2, kind: input, shape index: {}]
  %s3 = inlined_call_operand.hbm [shape: bf16[512,256], index: 3, kind: input, shape index: {}]
  %s4 = inlined_call_operand.<no memory space> [shape: f32[1], index: 4, kind: input, shape index: {}]
  %s5 = inlined_call_operand.hbm [shape: bf16[2,32,256], index: 5, kind: output, shape index: {}, may-alias: {0,5}]
  %s6 = sld [smem:[#allocation0]]
  $region38: #{tpu_custom_call.1} parent=0
    _
  %s8 = ssub.s32 1, %s6
  %s9 = scalar_select 0, %s8, %s6
  %10 = sst [smem:[#allocation2]] %s4
  $region1: #{tpu_custom_call.1} parent=0
    #allocation3 [shape = 'u8[32768]{0}', space=vmem, size = 0x8000, scoped, tag = 'input window, operand 0, single buffered']
    #allocation4 [shape = 's32[1]{0}', space=sflag, size = 0x4, scoped, tag = 'scoped memory for tpu_custom_call.1']
    #allocation5 [shape = 's32[1]{0}', space=sflag, size = 0x4, scoped, tag = 'scoped memory for tpu_custom_call.1']
    #allocation6 [shape = 'u8[262144]{0}', space=vmem, size = 0x40000, scoped, tag = 'input window, operand 3, single buffered']
    #allocation7 [shape = 's32[1]{0}', space=sflag, size = 0x4, scoped, tag = 'scoped memory for tpu_custom_call.1']
    #allocation8 [shape = 'u8[32768]{0}', space=vmem, size = 0x8000, scoped, tag = 'output window, operand 0, single buffered']
    %11 = vsyncpa [#allocation4], 0
    %12 = vsyncpa [#allocation7], 0
    %13 = vsyncpa [#allocation5], 0
    // Predicated region
    $region2: #{tpu_custom_call.1} parent=1 // pred_check
      _
    $region3: #{tpu_custom_call.1} parent=1 // pred_check_branch
      %15 = sbr.rel (0) target = $region5
    $region4: #{tpu_custom_call.1} parent=1 // pred_region
      %s17 = ssub.s32 1024, 1024
      %18 = vsyncadd [#allocation4], %s17
      %s19 = sshll.u32 [#allocation3], 4
      %s20 = int_to_ptr.vmem [resolvable:$true] %s19
      %25 = dma.hbm_to_vmem [thread:$0]  %s0, 1024, %s20, [#allocation4], 128, 128, 8
    $region5: #{tpu_custom_call.1} parent=1 // pred_fallthru
      _
    // Predicated region
    $region6: #{tpu_custom_call.1} parent=1 // pred_check
      _
    $region7: #{tpu_custom_call.1} parent=1 // pred_check_branch
      %27 = sbr.rel (0) target = $region9
    $region8: #{tpu_custom_call.1} parent=1 // pred_region
      _
    $region9: #{tpu_custom_call.1} parent=1 // pred_fallthru
      _
    // Predicated region
    $region10: #{tpu_custom_call.1} parent=1 // pred_check
      _
    $region11: #{tpu_custom_call.1} parent=1 // pred_check_branch
      %29 = sbr.rel (0) target = $region13
    $region12: #{tpu_custom_call.1} parent=1 // pred_region
      _
    $region13: #{tpu_custom_call.1} parent=1 // pred_fallthru
      _
    // Predicated region
    $region14: #{tpu_custom_call.1} parent=1 // pred_check
      _
    $region15: #{tpu_custom_call.1} parent=1 // pred_check_branch
      %31 = sbr.rel (0) target = $region17
    $region16: #{tpu_custom_call.1} parent=1 // pred_region
      %s33 = ssub.s32 8192, 8192
      %34 = vsyncadd [#allocation7], %s33
      %s35 = sshll.u32 [#allocation6], 4
      %s36 = int_to_ptr.vmem [resolvable:$true] %s35
      %41 = dma.hbm_to_vmem [thread:$0]  %s3, 8192, %s36, [#allocation7], 128, 128, 8
    $region17: #{tpu_custom_call.1} parent=1 // pred_fallthru
      _
    // Predicated region
    $region18: #{tpu_custom_call.1} parent=1 // pred_check
      _
    $region19: #{tpu_custom_call.1} parent=1 // pred_check_branch
      %43 = sbr.rel (0) target = $region21
    $region20: #{tpu_custom_call.1} parent=1 // pred_region
      _
    $region21: #{tpu_custom_call.1} parent=1 // pred_fallthru
      _
    // Predicated region
    $region22: #{tpu_custom_call.1} parent=1 // pred_check
      _
    $region23: #{tpu_custom_call.1} parent=1 // pred_check_branch
      %45 = sbr.rel (0) target = $region25
    $region24: #{tpu_custom_call.1} parent=1 // pred_region
      %46 = dma.done [#allocation4], 1024
    $region25: #{tpu_custom_call.1} parent=1 // pred_fallthru
      _
    // Predicated region
    $region26: #{tpu_custom_call.1} parent=1 // pred_check
      _
    $region27: #{tpu_custom_call.1} parent=1 // pred_check_branch
      %48 = sbr.rel (0) target = $region29
    $region28: #{tpu_custom_call.1} parent=1 // pred_region
      %49 = dma.done [#allocation7], 8192
    $region29: #{tpu_custom_call.1} parent=1 // pred_fallthru
      _
    %v50 = vld [vmem:[#allocation3] sm:$0xff]
    %v51 = vld [vmem:[#allocation3 + $0x8] sm:$0xff]
    %v52 = vld [vmem:[#allocation3 + $0x10] sm:$0xff]
    %v53 = vld [vmem:[#allocation3 + $0x18] sm:$0xff]
    %v54 = vld [vmem:[#allocation3 + $0x20] sm:$0xff]
    %v55 = vld [vmem:[#allocation3 + $0x28] sm:$0xff]
    %v56 = vld [vmem:[#allocation3 + $0x30] sm:$0xff]
    %v57 = vld [vmem:[#allocation3 + $0x38] sm:$0xff]
    %v58 = vunpack.c.l.bf16 %v50
    %v59 = vunpack.c.h.bf16 %v50
    %v60 = vunpack.c.l.bf16 %v51
    %v61 = vunpack.c.h.bf16 %v51
    %v62 = vunpack.c.l.bf16 %v52
    %v63 = vunpack.c.h.bf16 %v52
    %v64 = vunpack.c.l.bf16 %v53
    %v65 = vunpack.c.h.bf16 %v53
    %v66 = vunpack.c.l.bf16 %v54
    %v67 = vunpack.c.h.bf16 %v54
    %v68 = vunpack.c.l.bf16 %v55
    %v69 = vunpack.c.h.bf16 %v55
    %v70 = vunpack.c.l.bf16 %v56
    %v71 = vunpack.c.h.bf16 %v56
    %v72 = vunpack.c.l.bf16 %v57
    %v73 = vunpack.c.h.bf16 %v57
    %v74 = vmax.f32 %v58, %v59
    %75 = vmax.xlane.f32.xlu0 %v74
    %v76 = vpop.xlane.xlu0 %75
    %v77 = vmax.f32 %v60, %v61
    %78 = vmax.xlane.f32.xlu0 %v77
    %v79 = vpop.xlane.xlu0 %78
    %v80 = vmax.f32 %v62, %v63
    %81 = vmax.xlane.f32.xlu0 %v80
    %v82 = vpop.xlane.xlu0 %81
    %v83 = vmax.f32 %v64, %v65
    %84 = vmax.xlane.f32.xlu0 %v83
    %v85 = vpop.xlane.xlu0 %84
    %v86 = vmax.f32 %v66, %v67
    %87 = vmax.xlane.f32.xlu0 %v86
    %v88 = vpop.xlane.xlu0 %87
    %v89 = vmax.f32 %v68, %v69
    %90 = vmax.xlane.f32.xlu0 %v89
    %v91 = vpop.xlane.xlu0 %90
    %v92 = vmax.f32 %v70, %v71
    %93 = vmax.xlane.f32.xlu0 %v92
    %v94 = vpop.xlane.xlu0 %93
    %v95 = vmax.f32 %v72, %v73
    %96 = vmax.xlane.f32.xlu0 %v95
    %v97 = vpop.xlane.xlu0 %96
    %v98 = vadd.f32 %v58, %v59
    %99 = vadd.xlane.f32.xlu0 %v98
    %v100 = vpop.xlane.xlu0 %99
    %v101 = vadd.f32 %v60, %v61
    %102 = vadd.xlane.f32.xlu0 %v101
    %v103 = vpop.xlane.xlu0 %102
    %v104 = vadd.f32 %v62, %v63
    %105 = vadd.xlane.f32.xlu0 %v104
    %v106 = vpop.xlane.xlu0 %105
    %v107 = vadd.f32 %v64, %v65
    %108 = vadd.xlane.f32.xlu0 %v107
    %v109 = vpop.xlane.xlu0 %108
    %v110 = vadd.f32 %v66, %v67
    %111 = vadd.xlane.f32.xlu0 %v110
    %v112 = vpop.xlane.xlu0 %111
    %v113 = vadd.f32 %v68, %v69
    %114 = vadd.xlane.f32.xlu0 %v113
    %v115 = vpop.xlane.xlu0 %114
    %v116 = vadd.f32 %v70, %v71
    %117 = vadd.xlane.f32.xlu0 %v116
    %v118 = vpop.xlane.xlu0 %117
    %v119 = vadd.f32 %v72, %v73
    %120 = vadd.xlane.f32.xlu0 %v119
    %v121 = vpop.xlane.xlu0 %120
    %v122 = vmul.f32 %v100, 0.00390625
    %v123 = vmul.f32 %v103, 0.00390625
    %v124 = vmul.f32 %v106, 0.00390625
    %v125 = vmul.f32 %v109, 0.00390625
    %v126 = vmul.f32 %v112, 0.00390625
    %v127 = vmul.f32 %v115, 0.00390625
    %v128 = vmul.f32 %v118, 0.00390625
    %v129 = vmul.f32 %v121, 0.00390625
    %v138 = vlaneseq
    %v139 = vand.u32 %v138, 127
    %v140 = vlaneseq
    %v141 = vshrl.u32 %v140, 7
    %v142 = vsub.s32 %v139, %v141
    %v143 = vrot.slane %v76, %v142
    %v144 = vadd.s32 %v139, 4294967288
    %v145 = vlaneseq
    %v146 = vshrl.u32 %v145, 7
    %v147 = vsub.s32 %v144, %v146
    %v148 = vrot.slane %v79, %v147
    %vm149 = vcmask 130112
    %v150 = vsel %vm149, %v148, %v143
    %v151 = vadd.s32 %v139, 4294967280
    %v152 = vlaneseq
    %v153 = vshrl.u32 %v152, 7
    %v154 = vsub.s32 %v151, %v153
    %v155 = vrot.slane %v82, %v154
    %vm156 = vcmask 195712
    %v157 = vsel %vm156, %v155, %v150
    %v158 = vadd.s32 %v139, 4294967272
    %v159 = vlaneseq
    %v160 = vshrl.u32 %v159, 7
    %v161 = vsub.s32 %v158, %v160
    %v162 = vrot.slane %v85, %v161
    %vm163 = vcmask 261312
    %v164 = vsel %vm163, %v162, %v157
    %v165 = vlaneseq
    %v166 = vshrl.u32 %v165, 7
    %v167 = vsub.s32 %v139, %v166
    %v168 = vrot.slane %v88, %v167
    %v169 = vlaneseq
    %v170 = vshrl.u32 %v169, 7
    %v171 = vsub.s32 %v144, %v170
    %v172 = vrot.slane %v91, %v171
    %v173 = vsel %vm149, %v172, %v168
    %v174 = vlaneseq
    %v175 = vshrl.u32 %v174, 7
    %v176 = vsub.s32 %v151, %v175
    %v177 = vrot.slane %v94, %v176
    %v178 = vsel %vm156, %v177, %v173
    %v179 = vlaneseq
    %v180 = vshrl.u32 %v179, 7
    %v181 = vsub.s32 %v158, %v180
    %v182 = vrot.slane %v97, %v181
    %v183 = vsel %vm163, %v182, %v178
    %vm184 = vcmask 1041409
    %v185 = vsel %vm184, %v183, %v164
    %v195 = vlaneseq
    %v196 = vshrl.u32 %v195, 7
    %v197 = vsub.s32 %v139, %v196
    %v198 = vrot.slane %v122, %v197
    %v199 = vlaneseq
    %v200 = vshrl.u32 %v199, 7
    %v201 = vsub.s32 %v144, %v200
    %v202 = vrot.slane %v123, %v201
    %v203 = vsel %vm149, %v202, %v198
    %v204 = vlaneseq
    %v205 = vshrl.u32 %v204, 7
    %v206 = vsub.s32 %v151, %v205
    %v207 = vrot.slane %v124, %v206
    %v208 = vsel %vm156, %v207, %v203
    %v209 = vlaneseq
    %v210 = vshrl.u32 %v209, 7
    %v211 = vsub.s32 %v158, %v210
    %v212 = vrot.slane %v125, %v211
    %v213 = vsel %vm163, %v212, %v208
    %v214 = vlaneseq
    %v215 = vshrl.u32 %v214, 7
    %v216 = vsub.s32 %v139, %v215
    %v217 = vrot.slane %v126, %v216
    %v218 = vlaneseq
    %v219 = vshrl.u32 %v218, 7
    %v220 = vsub.s32 %v144, %v219
    %v221 = vrot.slane %v127, %v220
    %v222 = vsel %vm149, %v221, %v217
    %v223 = vlaneseq
    %v224 = vshrl.u32 %v223, 7
    %v225 = vsub.s32 %v151, %v224
    %v226 = vrot.slane %v128, %v225
    %v227 = vsel %vm156, %v226, %v222
    %v228 = vlaneseq
    %v229 = vshrl.u32 %v228, 7
    %v230 = vsub.s32 %v158, %v229
    %v231 = vrot.slane %v129, %v230
    %v232 = vsel %vm163, %v231, %v227
    %vm233 = vcmask 1043459
    %v234 = vsel %vm233, %v232, %v213
    %vm236 = vcmask 1041408
    %v237 = vsel %vm236, %v185, %v234
    %v238 = vld [vmem:[%s1] sm:$0xff]
    %v239 = vld [vmem:[%s1 + $0x8] sm:$0xff]
    %v240 = vld [vmem:[%s1 + $0x10] sm:$0xff]
    %v241 = vld [vmem:[%s1 + $0x18] sm:$0xff]
    %v242 = vld [vmem:[%s2] sm:$0x3]
    %v243 = vlaneseq
    %v244 = vshrl.u32 %v243, 7
    %v245 = vsub.s32 0, %v244
    %v246 = vrot.slane %v237, %v245
    %248 = vbcast.lane.b32.xlu0 %v246, 256
    %v249 = vpop.permute.xlu0 %248
    %s251 = sor.u32 256, 8
    %252 = vbcast.lane.b32.xlu0 %v246, %s251
    %v253 = vpop.permute.xlu0 %252
    %s255 = sor.u32 256, 16
    %256 = vbcast.lane.b32.xlu0 %v246, %s255
    %v257 = vpop.permute.xlu0 %256
    %s259 = sor.u32 256, 24
    %260 = vbcast.lane.b32.xlu0 %v246, %s259
    %v261 = vpop.permute.xlu0 %260
    %v262 = vlaneseq
    %v263 = vshrl.u32 %v262, 7
    %v264 = vsub.s32 1, %v263
    %v265 = vrot.slane %v237, %v264
    %267 = vbcast.lane.b32.xlu0 %v265, 256
    %v268 = vpop.permute.xlu0 %267
    %s270 = sor.u32 256, 8
    %271 = vbcast.lane.b32.xlu0 %v265, %s270
    %v272 = vpop.permute.xlu0 %271
    %s274 = sor.u32 256, 16
    %275 = vbcast.lane.b32.xlu0 %v265, %s274
    %v276 = vpop.permute.xlu0 %275
    %s278 = sor.u32 256, 24
    %279 = vbcast.lane.b32.xlu0 %v265, %s278
    %v280 = vpop.permute.xlu0 %279
    %v281 = vlaneseq
    %v282 = vshrl.u32 %v281, 7
    %v283 = vsub.s32 2, %v282
    %v284 = vrot.slane %v237, %v283
    %286 = vbcast.lane.b32.xlu0 %v284, 256
    %v287 = vpop.permute.xlu0 %286
    %s289 = sor.u32 256, 8
    %290 = vbcast.lane.b32.xlu0 %v284, %s289
    %v291 = vpop.permute.xlu0 %290
    %s293 = sor.u32 256, 16
    %294 = vbcast.lane.b32.xlu0 %v284, %s293
    %v295 = vpop.permute.xlu0 %294
    %s297 = sor.u32 256, 24
    %298 = vbcast.lane.b32.xlu0 %v284, %s297
    %v299 = vpop.permute.xlu0 %298
    %v300 = vlaneseq
    %v301 = vshrl.u32 %v300, 7
    %v302 = vsub.s32 3, %v301
    %v303 = vrot.slane %v237, %v302
    %305 = vbcast.lane.b32.xlu0 %v303, 256
    %v306 = vpop.permute.xlu0 %305
    %s308 = sor.u32 256, 8
    %309 = vbcast.lane.b32.xlu0 %v303, %s308
    %v310 = vpop.permute.xlu0 %309
    %s312 = sor.u32 256, 16
    %313 = vbcast.lane.b32.xlu0 %v303, %s312
    %v314 = vpop.permute.xlu0 %313
    %s316 = sor.u32 256, 24
    %317 = vbcast.lane.b32.xlu0 %v303, %s316
    %v318 = vpop.permute.xlu0 %317
    %v319 = vmul.f32 %v249, %v238
    %v320 = vmul.f32 %v253, %v239
    %v321 = vmul.f32 %v257, %v240
    %v322 = vmul.f32 %v261, %v241
    %v323 = vmul.f32 %v268, %v238
    %v324 = vmul.f32 %v272, %v239
    %v325 = vmul.f32 %v276, %v240
    %v326 = vmul.f32 %v280, %v241
    %v327 = vmul.f32 %v287, %v238
    %v328 = vmul.f32 %v291, %v239
    %v329 = vmul.f32 %v295, %v240
    %v330 = vmul.f32 %v299, %v241
    %v331 = vmul.f32 %v306, %v238
    %v332 = vmul.f32 %v310, %v239
    %v333 = vmul.f32 %v314, %v240
    %v334 = vmul.f32 %v318, %v241
    %vm335 = vcmask 15360
    %v336 = vsel %vm335, %v319, 0.0
    %v337 = vsel %vm335, %v320, 0.0
    %v338 = vadd.f32 %v336, %v337
    %v339 = vsel %vm335, %v321, 0.0
    %v340 = vadd.f32 %v338, %v339
    %v341 = vsel %vm335, %v322, 0.0
    %v342 = vadd.f32 %v340, %v341
    %v343 = vrot.slane %v342, 4
    %v344 = vadd.f32 %v342, %v343
    %v345 = vrot.slane %v344, 2
    %v346 = vadd.f32 %v344, %v345
    %v347 = vrot.slane %v346, 1
    %v348 = vadd.f32 %v346, %v347
    %v349 = vsel %vm335, %v323, 0.0
    %v350 = vsel %vm335, %v324, 0.0
    %v351 = vadd.f32 %v349, %v350
    %v352 = vsel %vm335, %v325, 0.0
    %v353 = vadd.f32 %v351, %v352
    %v354 = vsel %vm335, %v326, 0.0
    %v355 = vadd.f32 %v353, %v354
    %v356 = vrot.slane %v355, 4
    %v357 = vadd.f32 %v355, %v356
    %v358 = vrot.slane %v357, 2
    %v359 = vadd.f32 %v357, %v358
    %v360 = vrot.slane %v359, 1
    %v361 = vadd.f32 %v359, %v360
    %v362 = vsel %vm335, %v327, 0.0
    %v363 = vsel %vm335, %v328, 0.0
    %v364 = vadd.f32 %v362, %v363
    %v365 = vsel %vm335, %v329, 0.0
    %v366 = vadd.f32 %v364, %v365
    %v367 = vsel %vm335, %v330, 0.0
    %v368 = vadd.f32 %v366, %v367
    %v369 = vrot.slane %v368, 4
    %v370 = vadd.f32 %v368, %v369
    %v371 = vrot.slane %v370, 2
    %v372 = vadd.f32 %v370, %v371
    %v373 = vrot.slane %v372, 1
    %v374 = vadd.f32 %v372, %v373
    %v375 = vsel %vm335, %v331, 0.0
    %v376 = vsel %vm335, %v332, 0.0
    %v377 = vadd.f32 %v375, %v376
    %v378 = vsel %vm335, %v333, 0.0
    %v379 = vadd.f32 %v377, %v378
    %v380 = vsel %vm335, %v334, 0.0
    %v381 = vadd.f32 %v379, %v380
    %v382 = vrot.slane %v381, 4
    %v383 = vadd.f32 %v381, %v382
    %v384 = vrot.slane %v383, 2
    %v385 = vadd.f32 %v383, %v384
    %v386 = vrot.slane %v385, 1
    %v387 = vadd.f32 %v385, %v386
    %v388 = vmax.f32 %v348, 0.0
    %v389 = vmax.f32 %v361, 0.0
    %v390 = vmax.f32 %v374, 0.0
    %v391 = vmax.f32 %v387, 0.0
    %393 = vbcast.lane.b32.xlu0 %v388, 256
    %v394 = vpop.permute.xlu0 %393
    %396 = vbcast.lane.b32.xlu0 %v389, 256
    %v397 = vpop.permute.xlu0 %396
    %399 = vbcast.lane.b32.xlu0 %v390, 256
    %v400 = vpop.permute.xlu0 %399
    %402 = vbcast.lane.b32.xlu0 %v391, 256
    %v403 = vpop.permute.xlu0 %402
    %v404 = vmul.f32 %v394, %v242
    %v405 = vmul.f32 %v397, %v242
    %v406 = vmul.f32 %v400, %v242
    %v407 = vmul.f32 %v403, %v242
    %vm408 = vcmask 254976
    %v409 = vsel %vm408, %v404, 0.0
    %v410 = vrot.slane %v409, 4
    %v411 = vadd.f32 %v409, %v410
    %v412 = vrot.slane %v411, 2
    %v413 = vadd.f32 %v411, %v412
    %v414 = vrot.slane %v413, 1
    %v415 = vadd.f32 %v413, %v414
    %v416 = vsel %vm408, %v405, 0.0
    %v417 = vrot.slane %v416, 4
    %v418 = vadd.f32 %v416, %v417
    %v419 = vrot.slane %v418, 2
    %v420 = vadd.f32 %v418, %v419
    %v421 = vrot.slane %v420, 1
    %v422 = vadd.f32 %v420, %v421
    %v423 = vsel %vm408, %v406, 0.0
    %v424 = vrot.slane %v423, 4
    %v425 = vadd.f32 %v423, %v424
    %v426 = vrot.slane %v425, 2
    %v427 = vadd.f32 %v425, %v426
    %v428 = vrot.slane %v427, 1
    %v429 = vadd.f32 %v427, %v428
    %v430 = vsel %vm408, %v407, 0.0
    %v431 = vrot.slane %v430, 4
    %v432 = vadd.f32 %v430, %v431
    %v433 = vrot.slane %v432, 2
    %v434 = vadd.f32 %v432, %v433
    %v435 = vrot.slane %v434, 1
    %v436 = vadd.f32 %v434, %v435
    %v437 = vadd.f32 %v415, %v429
    %v438 = vadd.f32 %v422, %v436
    %v439 = vsub.f32 0.0, %v437
    %v440 = vsub.f32 0.0, %v438
    %v441 = vmul.f32 %v439, 1.442695
    %v442 = vpow.pop %v441
    %v443 = vmul.f32 %v440, 1.442695
    %v444 = vpow.pop %v443
    %v445 = vadd.f32 %v442, 1.0
    %v446 = vadd.f32 %v444, 1.0
    %v447 = vrcp.pop %v445
    %v448 = vrcp.pop %v446
    %450 = vbcast.lane.b32.xlu0 %v447, 256
    %v451 = vpop.permute.xlu0 %450
    %s453 = sor.u32 256, 8
    %454 = vbcast.lane.b32.xlu0 %v447, %s453
    %v455 = vpop.permute.xlu0 %454
    %s457 = sor.u32 256, 16
    %458 = vbcast.lane.b32.xlu0 %v447, %s457
    %v459 = vpop.permute.xlu0 %458
    %s461 = sor.u32 256, 24
    %462 = vbcast.lane.b32.xlu0 %v447, %s461
    %v463 = vpop.permute.xlu0 %462
    %465 = vbcast.lane.b32.xlu0 %v448, 256
    %v466 = vpop.permute.xlu0 %465
    %s468 = sor.u32 256, 8
    %469 = vbcast.lane.b32.xlu0 %v448, %s468
    %v470 = vpop.permute.xlu0 %469
    %s472 = sor.u32 256, 16
    %473 = vbcast.lane.b32.xlu0 %v448, %s472
    %v474 = vpop.permute.xlu0 %473
    %s476 = sor.u32 256, 24
    %477 = vbcast.lane.b32.xlu0 %v448, %s476
    %v478 = vpop.permute.xlu0 %477
    %v479 = vmul.f32 %v58, %v451
    %v480 = vmul.f32 %v59, %v451
    %v481 = vmul.f32 %v60, %v455
    %v482 = vmul.f32 %v61, %v455
    %v483 = vmul.f32 %v62, %v459
    %v484 = vmul.f32 %v63, %v459
    %v485 = vmul.f32 %v64, %v463
    %v486 = vmul.f32 %v65, %v463
    %v487 = vmul.f32 %v66, %v466
    %v488 = vmul.f32 %v67, %v466
    %v489 = vmul.f32 %v68, %v470
    %v490 = vmul.f32 %v69, %v470
    %v491 = vmul.f32 %v70, %v474
    %v492 = vmul.f32 %v71, %v474
    %v493 = vmul.f32 %v72, %v478
    %v494 = vmul.f32 %v73, %v478
    %v495 = vmax.f32 %v479, %v481
    %v496 = vmax.f32 %v495, %v483
    %v497 = vmax.f32 %v496, %v485
    %v498 = vrot.slane %v497, 4
    %v499 = vmax.f32 %v497, %v498
    %v500 = vrot.slane %v499, 2
    %v501 = vmax.f32 %v499, %v500
    %v502 = vrot.slane %v501, 1
    %v503 = vmax.f32 %v501, %v502
    %v504 = vmax.f32 %v480, %v482
    %v505 = vmax.f32 %v504, %v484
    %v506 = vmax.f32 %v505, %v486
    %v507 = vrot.slane %v506, 4
    %v508 = vmax.f32 %v506, %v507
    %v509 = vrot.slane %v508, 2
    %v510 = vmax.f32 %v508, %v509
    %v511 = vrot.slane %v510, 1
    %v512 = vmax.f32 %v510, %v511
    %v513 = vmax.f32 %v487, %v489
    %v514 = vmax.f32 %v513, %v491
    %v515 = vmax.f32 %v514, %v493
    %v516 = vrot.slane %v515, 4
    %v517 = vmax.f32 %v515, %v516
    %v518 = vrot.slane %v517, 2
    %v519 = vmax.f32 %v517, %v518
    %v520 = vrot.slane %v519, 1
    %v521 = vmax.f32 %v519, %v520
    %v522 = vmax.f32 %v488, %v490
    %v523 = vmax.f32 %v522, %v492
    %v524 = vmax.f32 %v523, %v494
    %v525 = vrot.slane %v524, 4
    %v526 = vmax.f32 %v524, %v525
    %v527 = vrot.slane %v526, 2
    %v528 = vmax.f32 %v526, %v527
    %v529 = vrot.slane %v528, 1
    %v530 = vmax.f32 %v528, %v529
    %v531 = vadd.f32 %v479, %v481
    %v532 = vadd.f32 %v531, %v483
    %v533 = vadd.f32 %v532, %v485
    %v534 = vrot.slane %v533, 4
    %v535 = vadd.f32 %v533, %v534
    %v536 = vrot.slane %v535, 2
    %v537 = vadd.f32 %v535, %v536
    %v538 = vrot.slane %v537, 1
    %v539 = vadd.f32 %v537, %v538
    %v540 = vadd.f32 %v480, %v482
    %v541 = vadd.f32 %v540, %v484
    %v542 = vadd.f32 %v541, %v486
    %v543 = vrot.slane %v542, 4
    %v544 = vadd.f32 %v542, %v543
    %v545 = vrot.slane %v544, 2
    %v546 = vadd.f32 %v544, %v545
    %v547 = vrot.slane %v546, 1
    %v548 = vadd.f32 %v546, %v547
    %v549 = vadd.f32 %v487, %v489
    %v550 = vadd.f32 %v549, %v491
    %v551 = vadd.f32 %v550, %v493
    %v552 = vrot.slane %v551, 4
    %v553 = vadd.f32 %v551, %v552
    %v554 = vrot.slane %v553, 2
    %v555 = vadd.f32 %v553, %v554
    %v556 = vrot.slane %v555, 1
    %v557 = vadd.f32 %v555, %v556
    %v558 = vadd.f32 %v488, %v490
    %v559 = vadd.f32 %v558, %v492
    %v560 = vadd.f32 %v559, %v494
    %v561 = vrot.slane %v560, 4
    %v562 = vadd.f32 %v560, %v561
    %v563 = vrot.slane %v562, 2
    %v564 = vadd.f32 %v562, %v563
    %v565 = vrot.slane %v564, 1
    %v566 = vadd.f32 %v564, %v565
    %v567 = vmul.f32 %v539, 0.03125
    %v568 = vmul.f32 %v548, 0.03125
    %v569 = vmul.f32 %v557, 0.03125
    %v570 = vmul.f32 %v566, 0.03125
    %v575 = vsel %vm184, %v521, %v503
    %v576 = vsel %vm184, %v530, %v512
    %v583 = vsel %vm184, %v569, %v567
    %v584 = vsel %vm184, %v570, %v568
    %v587 = vpack.c.bf16 %v575, %v575
    %v588 = vpack.c.bf16 %v576, %v576
    %v589 = vpack.c.bf16 %v583, %v583
    %v590 = vpack.c.bf16 %v584, %v584
    %v591 = vld [vmem:[#allocation6] sm:$0xff]
    %v592 = vld [vmem:[#allocation6 + $0x8] sm:$0xff]
    %v593 = vld [vmem:[#allocation6 + $0x10] sm:$0xff]
    %v594 = vld [vmem:[#allocation6 + $0x18] sm:$0xff]
    %v595 = vld [vmem:[#allocation6 + $0x20] sm:$0xff]
    %v596 = vld [vmem:[#allocation6 + $0x28] sm:$0xff]
    %v597 = vld [vmem:[#allocation6 + $0x30] sm:$0xff]
    %v598 = vld [vmem:[#allocation6 + $0x38] sm:$0xff]
    %v599 = vld [vmem:[#allocation6 + $0x40] sm:$0xff]
    %v600 = vld [vmem:[#allocation6 + $0x48] sm:$0xff]
    %v601 = vld [vmem:[#allocation6 + $0x50] sm:$0xff]
    %v602 = vld [vmem:[#allocation6 + $0x58] sm:$0xff]
    %v603 = vld [vmem:[#allocation6 + $0x60] sm:$0xff]
    %v604 = vld [vmem:[#allocation6 + $0x68] sm:$0xff]
    %v605 = vld [vmem:[#allocation6 + $0x70] sm:$0xff]
    %v606 = vld [vmem:[#allocation6 + $0x78] sm:$0xff]
    %v607 = vld [vmem:[#allocation6 + $0x80] sm:$0xff]
    %v608 = vld [vmem:[#allocation6 + $0x88] sm:$0xff]
    %v609 = vld [vmem:[#allocation6 + $0x90] sm:$0xff]
    %v610 = vld [vmem:[#allocation6 + $0x98] sm:$0xff]
    %v611 = vld [vmem:[#allocation6 + $0xa0] sm:$0xff]
    %v612 = vld [vmem:[#allocation6 + $0xa8] sm:$0xff]
    %v613 = vld [vmem:[#allocation6 + $0xb0] sm:$0xff]
    %v614 = vld [vmem:[#allocation6 + $0xb8] sm:$0xff]
    %v615 = vld [vmem:[#allocation6 + $0xc0] sm:$0xff]
    %v616 = vld [vmem:[#allocation6 + $0xc8] sm:$0xff]
    %v617 = vld [vmem:[#allocation6 + $0xd0] sm:$0xff]
    %v618 = vld [vmem:[#allocation6 + $0xd8] sm:$0xff]
    %v619 = vld [vmem:[#allocation6 + $0xe0] sm:$0xff]
    %v620 = vld [vmem:[#allocation6 + $0xe8] sm:$0xff]
    %v621 = vld [vmem:[#allocation6 + $0xf0] sm:$0xff]
    %v622 = vld [vmem:[#allocation6 + $0xf8] sm:$0xff]
    %v623 = vld [vmem:[#allocation6 + $0x100] sm:$0xff]
    %v624 = vld [vmem:[#allocation6 + $0x108] sm:$0xff]
    %v625 = vld [vmem:[#allocation6 + $0x110] sm:$0xff]
    %v626 = vld [vmem:[#allocation6 + $0x118] sm:$0xff]
    %v627 = vld [vmem:[#allocation6 + $0x120] sm:$0xff]
    %v628 = vld [vmem:[#allocation6 + $0x128] sm:$0xff]
    %v629 = vld [vmem:[#allocation6 + $0x130] sm:$0xff]
    %v630 = vld [vmem:[#allocation6 + $0x138] sm:$0xff]
    %v631 = vld [vmem:[#allocation6 + $0x140] sm:$0xff]
    %v632 = vld [vmem:[#allocation6 + $0x148] sm:$0xff]
    %v633 = vld [vmem:[#allocation6 + $0x150] sm:$0xff]
    %v634 = vld [vmem:[#allocation6 + $0x158] sm:$0xff]
    %v635 = vld [vmem:[#allocation6 + $0x160] sm:$0xff]
    %v636 = vld [vmem:[#allocation6 + $0x168] sm:$0xff]
    %v637 = vld [vmem:[#allocation6 + $0x170] sm:$0xff]
    %v638 = vld [vmem:[#allocation6 + $0x178] sm:$0xff]
    %v639 = vld [vmem:[#allocation6 + $0x180] sm:$0xff]
    %v640 = vld [vmem:[#allocation6 + $0x188] sm:$0xff]
    %v641 = vld [vmem:[#allocation6 + $0x190] sm:$0xff]
    %v642 = vld [vmem:[#allocation6 + $0x198] sm:$0xff]
    %v643 = vld [vmem:[#allocation6 + $0x1a0] sm:$0xff]
    %v644 = vld [vmem:[#allocation6 + $0x1a8] sm:$0xff]
    %v645 = vld [vmem:[#allocation6 + $0x1b0] sm:$0xff]
    %v646 = vld [vmem:[#allocation6 + $0x1b8] sm:$0xff]
    %v647 = vld [vmem:[#allocation6 + $0x1c0] sm:$0xff]
    %v648 = vld [vmem:[#allocation6 + $0x1c8] sm:$0xff]
    %v649 = vld [vmem:[#allocation6 + $0x1d0] sm:$0xff]
    %v650 = vld [vmem:[#allocation6 + $0x1d8] sm:$0xff]
    %v651 = vld [vmem:[#allocation6 + $0x1e0] sm:$0xff]
    %v652 = vld [vmem:[#allocation6 + $0x1e8] sm:$0xff]
    %v653 = vld [vmem:[#allocation6 + $0x1f0] sm:$0xff]
    %v654 = vld [vmem:[#allocation6 + $0x1f8] sm:$0xff]
    %s655 = sld [smem:[#allocation2]]
    %v656 = vstv %s655
    %v721 = vunpack.c.l.b16 %v591
    %v722 = vunpack.c.h.b16 %v591
    %v723 = vunpack.c.l.b16 %v592
    %v724 = vunpack.c.h.b16 %v592
    %v725 = vunpack.c.l.b16 %v593
    %v726 = vunpack.c.h.b16 %v593
    %v727 = vunpack.c.l.b16 %v594
    %v728 = vunpack.c.h.b16 %v594
    %v729 = vunpack.c.l.b16 %v595
    %v730 = vunpack.c.h.b16 %v595
    %v731 = vunpack.c.l.b16 %v596
    %v732 = vunpack.c.h.b16 %v596
    %v733 = vunpack.c.l.b16 %v597
    %v734 = vunpack.c.h.b16 %v597
    %v735 = vunpack.c.l.b16 %v598
    %v736 = vunpack.c.h.b16 %v598
    %v737 = vunpack.c.l.b16 %v599
    %v738 = vunpack.c.h.b16 %v599
    %v739 = vunpack.c.l.b16 %v600
    %v740 = vunpack.c.h.b16 %v600
    %v741 = vunpack.c.l.b16 %v601
    %v742 = vunpack.c.h.b16 %v601
    %v743 = vunpack.c.l.b16 %v602
    %v744 = vunpack.c.h.b16 %v602
    %v745 = vunpack.c.l.b16 %v603
    %v746 = vunpack.c.h.b16 %v603
    %v747 = vunpack.c.l.b16 %v604
    %v748 = vunpack.c.h.b16 %v604
    %v749 = vunpack.c.l.b16 %v605
    %v750 = vunpack.c.h.b16 %v605
    %v751 = vunpack.c.l.b16 %v606
    %v752 = vunpack.c.h.b16 %v606
    %v753 = vunpack.c.l.b16 %v607
    %v754 = vunpack.c.h.b16 %v607
    %v755 = vunpack.c.l.b16 %v608
    %v756 = vunpack.c.h.b16 %v608
    %v757 = vunpack.c.l.b16 %v609
    %v758 = vunpack.c.h.b16 %v609
    %v759 = vunpack.c.l.b16 %v610
    %v760 = vunpack.c.h.b16 %v610
    %v761 = vunpack.c.l.b16 %v611
    %v762 = vunpack.c.h.b16 %v611
    %v763 = vunpack.c.l.b16 %v612
    %v764 = vunpack.c.h.b16 %v612
    %v765 = vunpack.c.l.b16 %v613
    %v766 = vunpack.c.h.b16 %v613
    %v767 = vunpack.c.l.b16 %v614
    %v768 = vunpack.c.h.b16 %v614
    %v769 = vunpack.c.l.b16 %v615
    %v770 = vunpack.c.h.b16 %v615
    %v771 = vunpack.c.l.b16 %v616
    %v772 = vunpack.c.h.b16 %v616
    %v773 = vunpack.c.l.b16 %v617
    %v774 = vunpack.c.h.b16 %v617
    %v775 = vunpack.c.l.b16 %v618
    %v776 = vunpack.c.h.b16 %v618
    %v777 = vunpack.c.l.b16 %v619
    %v778 = vunpack.c.h.b16 %v619
    %v779 = vunpack.c.l.b16 %v620
    %v780 = vunpack.c.h.b16 %v620
    %v781 = vunpack.c.l.b16 %v621
    %v782 = vunpack.c.h.b16 %v621
    %v783 = vunpack.c.l.b16 %v622
    %v784 = vunpack.c.h.b16 %v622
    %v785 = vunpack.c.l.b16 %v623
    %v786 = vunpack.c.h.b16 %v623
    %v787 = vunpack.c.l.b16 %v624
    %v788 = vunpack.c.h.b16 %v624
    %v789 = vunpack.c.l.b16 %v625
    %v790 = vunpack.c.h.b16 %v625
    %v791 = vunpack.c.l.b16 %v626
    %v792 = vunpack.c.h.b16 %v626
    %v793 = vunpack.c.l.b16 %v627
    %v794 = vunpack.c.h.b16 %v627
    %v795 = vunpack.c.l.b16 %v628
    %v796 = vunpack.c.h.b16 %v628
    %v797 = vunpack.c.l.b16 %v629
    %v798 = vunpack.c.h.b16 %v629
    %v799 = vunpack.c.l.b16 %v630
    %v800 = vunpack.c.h.b16 %v630
    %v801 = vunpack.c.l.b16 %v631
    %v802 = vunpack.c.h.b16 %v631
    %v803 = vunpack.c.l.b16 %v632
    %v804 = vunpack.c.h.b16 %v632
    %v805 = vunpack.c.l.b16 %v633
    %v806 = vunpack.c.h.b16 %v633
    %v807 = vunpack.c.l.b16 %v634
    %v808 = vunpack.c.h.b16 %v634
    %v809 = vunpack.c.l.b16 %v635
    %v810 = vunpack.c.h.b16 %v635
    %v811 = vunpack.c.l.b16 %v636
    %v812 = vunpack.c.h.b16 %v636
    %v813 = vunpack.c.l.b16 %v637
    %v814 = vunpack.c.h.b16 %v637
    %v815 = vunpack.c.l.b16 %v638
    %v816 = vunpack.c.h.b16 %v638
    %v817 = vunpack.c.l.b16 %v639
    %v818 = vunpack.c.h.b16 %v639
    %v819 = vunpack.c.l.b16 %v640
    %v820 = vunpack.c.h.b16 %v640
    %v821 = vunpack.c.l.b16 %v641
    %v822 = vunpack.c.h.b16 %v641
    %v823 = vunpack.c.l.b16 %v642
    %v824 = vunpack.c.h.b16 %v642
    %v825 = vunpack.c.l.b16 %v643
    %v826 = vunpack.c.h.b16 %v643
    %v827 = vunpack.c.l.b16 %v644
    %v828 = vunpack.c.h.b16 %v644
    %v829 = vunpack.c.l.b16 %v645
    %v830 = vunpack.c.h.b16 %v645
    %v831 = vunpack.c.l.b16 %v646
    %v832 = vunpack.c.h.b16 %v646
    %v833 = vunpack.c.l.b16 %v647
    %v834 = vunpack.c.h.b16 %v647
    %v835 = vunpack.c.l.b16 %v648
    %v836 = vunpack.c.h.b16 %v648
    %v837 = vunpack.c.l.b16 %v649
    %v838 = vunpack.c.h.b16 %v649
    %v839 = vunpack.c.l.b16 %v650
    %v840 = vunpack.c.h.b16 %v650
    %v841 = vunpack.c.l.b16 %v651
    %v842 = vunpack.c.h.b16 %v651
    %v843 = vunpack.c.l.b16 %v652
    %v844 = vunpack.c.h.b16 %v652
    %v845 = vunpack.c.l.b16 %v653
    %v846 = vunpack.c.h.b16 %v653
    %v847 = vunpack.c.l.b16 %v654
    %v848 = vunpack.c.h.b16 %v654
    %v849 = vpack.c.b16 %v723, %v721
    %v850 = vpack.c.b16 %v724, %v722
    %v851 = vpack.c.b16 %v727, %v725
    %v852 = vpack.c.b16 %v728, %v726
    %v853 = vpack.c.b16 %v731, %v729
    %v854 = vpack.c.b16 %v732, %v730
    %v855 = vpack.c.b16 %v735, %v733
    %v856 = vpack.c.b16 %v736, %v734
    %v857 = vpack.c.b16 %v739, %v737
    %v858 = vpack.c.b16 %v740, %v738
    %v859 = vpack.c.b16 %v743, %v741
    %v860 = vpack.c.b16 %v744, %v742
    %v861 = vpack.c.b16 %v747, %v745
    %v862 = vpack.c.b16 %v748, %v746
    %v863 = vpack.c.b16 %v751, %v749
    %v864 = vpack.c.b16 %v752, %v750
    %v865 = vpack.c.b16 %v755, %v753
    %v866 = vpack.c.b16 %v756, %v754
    %v867 = vpack.c.b16 %v759, %v757
    %v868 = vpack.c.b16 %v760, %v758
    %v869 = vpack.c.b16 %v763, %v761
    %v870 = vpack.c.b16 %v764, %v762
    %v871 = vpack.c.b16 %v767, %v765
    %v872 = vpack.c.b16 %v768, %v766
    %v873 = vpack.c.b16 %v771, %v769
    %v874 = vpack.c.b16 %v772, %v770
    %v875 = vpack.c.b16 %v775, %v773
    %v876 = vpack.c.b16 %v776, %v774
    %v877 = vpack.c.b16 %v779, %v777
    %v878 = vpack.c.b16 %v780, %v778
    %v879 = vpack.c.b16 %v783, %v781
    %v880 = vpack.c.b16 %v784, %v782
    %v881 = vpack.c.b16 %v787, %v785
    %v882 = vpack.c.b16 %v788, %v786
    %v883 = vpack.c.b16 %v791, %v789
    %v884 = vpack.c.b16 %v792, %v790
    %v885 = vpack.c.b16 %v795, %v793
    %v886 = vpack.c.b16 %v796, %v794
    %v887 = vpack.c.b16 %v799, %v797
    %v888 = vpack.c.b16 %v800, %v798
    %v889 = vpack.c.b16 %v803, %v801
    %v890 = vpack.c.b16 %v804, %v802
    %v891 = vpack.c.b16 %v807, %v805
    %v892 = vpack.c.b16 %v808, %v806
    %v893 = vpack.c.b16 %v811, %v809
    %v894 = vpack.c.b16 %v812, %v810
    %v895 = vpack.c.b16 %v815, %v813
    %v896 = vpack.c.b16 %v816, %v814
    %v897 = vpack.c.b16 %v819, %v817
    %v898 = vpack.c.b16 %v820, %v818
    %v899 = vpack.c.b16 %v823, %v821
    %v900 = vpack.c.b16 %v824, %v822
    %v901 = vpack.c.b16 %v827, %v825
    %v902 = vpack.c.b16 %v828, %v826
    %v903 = vpack.c.b16 %v831, %v829
    %v904 = vpack.c.b16 %v832, %v830
    %v905 = vpack.c.b16 %v835, %v833
    %v906 = vpack.c.b16 %v836, %v834
    %v907 = vpack.c.b16 %v839, %v837
    %v908 = vpack.c.b16 %v840, %v838
    %v909 = vpack.c.b16 %v843, %v841
    %v910 = vpack.c.b16 %v844, %v842
    %v911 = vpack.c.b16 %v847, %v845
    %v912 = vpack.c.b16 %v848, %v846
    %977 = vmatprep.subr.bf16.mxu0 %v864
    %978 = vmatpush1.bf16.msra.mxu0 %v863
    %979 = vmatprep.subr.bf16.mxu0 %v862
    %980 = vmatpush1.bf16.msra.mxu0 %v861
    %981 = vmatprep.subr.bf16.mxu0 %v860
    %982 = vmatpush1.bf16.msra.mxu0 %v859
    %983 = vmatprep.subr.bf16.mxu0 %v858
    %984 = vmatpush1.bf16.msra.mxu0 %v857
    %985 = vmatprep.subr.bf16.mxu0 %v856
    %986 = vmatpush1.bf16.msra.mxu0 %v855
    %987 = vmatprep.subr.bf16.mxu0 %v854
    %988 = vmatpush1.bf16.msra.mxu0 %v853
    %989 = vmatprep.subr.bf16.mxu0 %v852
    %990 = vmatpush1.bf16.msra.mxu0 %v851
    %991 = vmatprep.subr.bf16.mxu0 %v850
    %992 = vmatpush1.bf16.msra.mxu0 %v849
    %993 = vmatprep.subr.bf16.mxu0 %v880
    %994 = vmatpush2.bf16.msra.mxu0 %v879
    %995 = vmatprep.subr.bf16.mxu0 %v878
    %996 = vmatpush2.bf16.msra.mxu0 %v877
    %997 = vmatprep.subr.bf16.mxu0 %v876
    %998 = vmatpush2.bf16.msra.mxu0 %v875
    %999 = vmatprep.subr.bf16.mxu0 %v874
    %1000 = vmatpush2.bf16.msra.mxu0 %v873
    %1001 = vmatprep.subr.bf16.mxu0 %v872
    %1002 = vmatpush2.bf16.msra.mxu0 %v871
    %1003 = vmatprep.subr.bf16.mxu0 %v870
    %1004 = vmatpush2.bf16.msra.mxu0 %v869
    %1005 = vmatprep.subr.bf16.mxu0 %v868
    %1006 = vmatpush2.bf16.msra.mxu0 %v867
    %1007 = vmatprep.subr.bf16.mxu0 %v866
    %1008 = vmatpush2.bf16.msra.mxu0 %v865
    %1009 = vmatprep.mubr.bf16.mxu0 %v588
    %1010 = vmatmul.mubr.bf16.gmra.mxu0 %v587
    %v1011 = vpop.f32.mrf.mxu0
    %v1012 = vadd.f32 %v656, %v1011
    %v1013 = vpop.f32.mrf.mxu0
    %v1014 = vadd.f32 %v656, %v1013
    %v1015 = vpop.f32.mrf.mxu0
    %v1016 = vpop.f32.mrf.mxu0
    %1017 = vdwg.mxu0
    %1018 = vmatprep.subr.bf16.mxu0 %v896
    %1019 = vmatpush1.bf16.msra.mxu0 %v895
    %1020 = vmatprep.subr.bf16.mxu0 %v894
    %1021 = vmatpush1.bf16.msra.mxu0 %v893
    %1022 = vmatprep.subr.bf16.mxu0 %v892
    %1023 = vmatpush1.bf16.msra.mxu0 %v891
    %1024 = vmatprep.subr.bf16.mxu0 %v890
    %1025 = vmatpush1.bf16.msra.mxu0 %v889
    %1026 = vmatprep.subr.bf16.mxu0 %v888
    %1027 = vmatpush1.bf16.msra.mxu0 %v887
    %1028 = vmatprep.subr.bf16.mxu0 %v886
    %1029 = vmatpush1.bf16.msra.mxu0 %v885
    %1030 = vmatprep.subr.bf16.mxu0 %v884
    %1031 = vmatpush1.bf16.msra.mxu0 %v883
    %1032 = vmatprep.subr.bf16.mxu0 %v882
    %1033 = vmatpush1.bf16.msra.mxu0 %v881
    %1034 = vmatprep.subr.bf16.mxu0 %v912
    %1035 = vmatpush2.bf16.msra.mxu0 %v911
    %1036 = vmatprep.subr.bf16.mxu0 %v910
    %1037 = vmatpush2.bf16.msra.mxu0 %v909
    %1038 = vmatprep.subr.bf16.mxu0 %v908
    %1039 = vmatpush2.bf16.msra.mxu0 %v907
    %1040 = vmatprep.subr.bf16.mxu0 %v906
    %1041 = vmatpush2.bf16.msra.mxu0 %v905
    %1042 = vmatprep.subr.bf16.mxu0 %v904
    %1043 = vmatpush2.bf16.msra.mxu0 %v903
    %1044 = vmatprep.subr.bf16.mxu0 %v902
    %1045 = vmatpush2.bf16.msra.mxu0 %v901
    %1046 = vmatprep.subr.bf16.mxu0 %v900
    %1047 = vmatpush2.bf16.msra.mxu0 %v899
    %1048 = vmatprep.subr.bf16.mxu0 %v898
    %1049 = vmatpush2.bf16.msra.mxu0 %v897
    %1050 = vmatprep.mubr.bf16.mxu0 %v590
    %1051 = vmatmul.mubr.bf16.gmra.mxu0 %v589
    %v1052 = vpop.f32.mrf.mxu0
    %v1053 = vadd.f32 %v1012, %v1052
    %v1054 = vpop.f32.mrf.mxu0
    %v1055 = vadd.f32 %v1014, %v1054
    %v1056 = vpop.f32.mrf.mxu0
    %v1057 = vpop.f32.mrf.mxu0
    %1058 = vdwg.mxu0
    %v1059 = vsub.f32 0.0, %v1053
    %v1060 = vsub.f32 0.0, %v1055
    %v1061 = vmul.f32 %v1059, 1.442695
    %v1062 = vpow.pop %v1061
    %v1063 = vmul.f32 %v1060, 1.442695
    %v1064 = vpow.pop %v1063
    %v1065 = vadd.f32 %v1062, 1.0
    %v1066 = vadd.f32 %v1064, 1.0
    %v1067 = vrcp.pop %v1065
    %v1068 = vrcp.pop %v1066
    %v1071 = vcombine.low %v1067, %v1068
    %v1073 = vunpack.c.l.s4 1966171168
    %v1074 = vunpack.c.0.s8 %v1073
    %v1075 = vlaneseq
    %v1076 = vshrl.u32 %v1075, 7
    %v1077 = vsub.s32 %v1074, %v1076
    %v1078 = vrot.slane %v1071, %v1077
    %v1079 = vcombine.high %v1078, %v1078
    %v1081 = vunpack.c.l.s4 1966171168
    %v1082 = vunpack.c.0.s8 %v1081
    %v1083 = vlaneseq
    %v1084 = vshrl.u32 %v1083, 7
    %v1085 = vsub.s32 %v1082, %v1084
    %v1086 = vrot.slane %v1078, %v1085
    %v1088 = vunpack.c.l.s4 1966171168
    %v1089 = vunpack.c.0.s8 %v1088
    %v1090 = vlaneseq
    %v1091 = vshrl.u32 %v1090, 7
    %v1092 = vsub.s32 %v1089, %v1091
    %v1093 = vrot.slane %v1079, %v1092
    %v1094 = vlaneseq
    %v1095 = vshrl.u32 %v1094, 7
    %v1096 = vsub.s32 0, %v1095
    %v1097 = vrot.slane %v1086, %v1096
    %v1098 = vlaneseq
    %v1099 = vshrl.u32 %v1098, 7
    %v1100 = vsub.s32 1, %v1099
    %v1101 = vrot.slane %v1086, %v1100
    %v1102 = vlaneseq
    %v1103 = vshrl.u32 %v1102, 7
    %v1104 = vsub.s32 0, %v1103
    %v1105 = vrot.slane %v1093, %v1104
    %v1106 = vlaneseq
    %v1107 = vshrl.u32 %v1106, 7
    %v1108 = vsub.s32 1, %v1107
    %v1109 = vrot.slane %v1093, %v1108
    %v1114 = vmul.f32 %v479, %v1097
    %v1115 = vmul.f32 %v480, %v1101
    %v1116 = vmul.f32 %v481, %v1097
    %v1117 = vmul.f32 %v482, %v1101
    %v1118 = vmul.f32 %v483, %v1097
    %v1119 = vmul.f32 %v484, %v1101
    %v1120 = vmul.f32 %v485, %v1097
    %v1121 = vmul.f32 %v486, %v1101
    %v1122 = vmul.f32 %v487, %v1105
    %v1123 = vmul.f32 %v488, %v1109
    %v1124 = vmul.f32 %v489, %v1105
    %v1125 = vmul.f32 %v490, %v1109
    %v1126 = vmul.f32 %v491, %v1105
    %v1127 = vmul.f32 %v492, %v1109
    %v1128 = vmul.f32 %v493, %v1105
    %v1129 = vmul.f32 %v494, %v1109
    %v1130 = vpack.c.bf16 %v1116, %v1114
    %v1131 = vpack.c.bf16 %v1117, %v1115
    %v1132 = vpack.c.bf16 %v1120, %v1118
    %v1133 = vpack.c.bf16 %v1121, %v1119
    %v1134 = vpack.c.bf16 %v1124, %v1122
    %v1135 = vpack.c.bf16 %v1125, %v1123
    %v1136 = vpack.c.bf16 %v1128, %v1126
    %v1137 = vpack.c.bf16 %v1129, %v1127
    %v1146 = vunpack.c.l.b16 %v1130
    %v1147 = vunpack.c.l.b16 %v1131
    %v1148 = vunpack.c.h.b16 %v1130
    %v1149 = vunpack.c.h.b16 %v1131
    %v1150 = vunpack.c.l.b16 %v1132
    %v1151 = vunpack.c.l.b16 %v1133
    %v1152 = vunpack.c.h.b16 %v1132
    %v1153 = vunpack.c.h.b16 %v1133
    %v1154 = vunpack.c.l.b16 %v1134
    %v1155 = vunpack.c.l.b16 %v1135
    %v1156 = vunpack.c.h.b16 %v1134
    %v1157 = vunpack.c.h.b16 %v1135
    %v1158 = vunpack.c.l.b16 %v1136
    %v1159 = vunpack.c.l.b16 %v1137
    %v1160 = vunpack.c.h.b16 %v1136
    %v1161 = vunpack.c.h.b16 %v1137
    %v1162 = vpack.c.b16 %v1147, %v1146
    %v1163 = vpack.c.b16 %v1149, %v1148
    %v1164 = vpack.c.b16 %v1151, %v1150
    %v1165 = vpack.c.b16 %v1153, %v1152
    %v1166 = vpack.c.b16 %v1155, %v1154
    %v1167 = vpack.c.b16 %v1157, %v1156
    %v1168 = vpack.c.b16 %v1159, %v1158
    %v1169 = vpack.c.b16 %v1161, %v1160
    %1178 = vst [vmem:[#allocation8] sm:$0xff] %v1162
    %1179 = vst [vmem:[#allocation8 + $0x8] sm:$0xff] %v1163
    %1180 = vst [vmem:[#allocation8 + $0x10] sm:$0xff] %v1164
    %1181 = vst [vmem:[#allocation8 + $0x18] sm:$0xff] %v1165
    %1182 = vst [vmem:[#allocation8 + $0x20] sm:$0xff] %v1166
    %1183 = vst [vmem:[#allocation8 + $0x28] sm:$0xff] %v1167
    %1184 = vst [vmem:[#allocation8 + $0x30] sm:$0xff] %v1168
    %1185 = vst [vmem:[#allocation8 + $0x38] sm:$0xff] %v1169
    // Predicated region
    $region30: #{tpu_custom_call.1} parent=1 // pred_check
      _
    $region31: #{tpu_custom_call.1} parent=1 // pred_check_branch
      %1187 = sbr.rel (0) target = $region33
    $region32: #{tpu_custom_call.1} parent=1 // pred_region
      %s1189 = ssub.s32 1024, 1024
      %1190 = vsyncadd [#allocation5], %s1189
      %s1191 = sshll.u32 [#allocation8], 4
      %s1192 = int_to_ptr.vmem [resolvable:$true] %s1191
      %1197 = dma.vmem_to_hbm [thread:$0]  %s1192, 1024, %s5, [#allocation5], 128, 128, 8
    $region33: #{tpu_custom_call.1} parent=1 // pred_fallthru
      _
    // Predicated region
    $region34: #{tpu_custom_call.1} parent=1 // pred_check
      _
    $region35: #{tpu_custom_call.1} parent=1 // pred_check_branch
      %1199 = sbr.rel (0) target = $region37
    $region36: #{tpu_custom_call.1} parent=1 // pred_region
      %1200 = dma.done [#allocation5], 1024
    $region37: #{tpu_custom_call.1} parent=1 // pred_fallthru
      _
    %1201 = vsyncpa [#allocation4], 1
    %1202 = vsyncpa [#allocation7], 1
    %1203 = vsyncpa [#allocation5], 1

</llo_original>
